<compile_context>
chip_gen: v7x
topology: tpu7x:2x2x1
jax: 0.10.0
libtpu: 0.0.40
codegen_flags: <defaults>
</compile_context>

<pallas_src>
import jax
import jax.numpy as jnp
from jax.experimental import pallas as pl
from jax.experimental.pallas import tpu as pltpu

_EPS = 1e-5
_LANE = 128
_MAX_LANE_TILE = 2048  # large tiles amortize the ~0.35us per-grid-step overhead


def _round_up(x, m):
    return -(-x // m) * m


def _pick_lane_tile(l_out):
    """Pad L_out up to a multiple of 128 and pick the largest 128-multiple tile
    (<= _MAX_LANE_TILE) that divides the padded length."""
    lp = _round_up(l_out, _LANE)
    d = lp // _LANE
    t = 1
    for cand in range(min(d, _MAX_LANE_TILE // _LANE), 0, -1):
        if d % cand == 0:
            t = cand
            break
    return lp, t * _LANE


def _compiler_params(semantics, est_vmem_bytes):
    kwargs = dict(dimension_semantics=semantics)
    if est_vmem_bytes > 32 * 1024 * 1024:
        # Leave headroom below v7x's 64 MiB physical VMEM per TensorCore.
        kwargs["vmem_limit_bytes"] = min(int(est_vmem_bytes * 5 // 4), 48 * 1024 * 1024)
    return pltpu.CompilerParams(**kwargs)


def _conv_stats_kernel(xc_ref, w_ref, y_ref, sum_ref, sq_ref):
    """One lane tile of the conv (single fused MXU dot) + per-n BN partial stats.

    xc_ref:  (Kc, tl)    bf16  im2col tile (taps x C_in on sublanes, L on lanes)
    w_ref:   (C_out, Kc) bf16  flattened conv weight (resident)
    y_ref:   (C_out, tl) bf16  pre-BN conv output tile (lane-dense store)
    sum_ref: (C_out, 1)  f32   per-n running sum   (resident across L-tile axis)
    sq_ref:  (C_out, 1)  f32   per-n running sumsq (resident across L-tile axis)
    """
    @pl.when(pl.program_id(1) == 0)
    def _init():
        sum_ref[...] = jnp.zeros_like(sum_ref)
        sq_ref[...] = jnp.zeros_like(sq_ref)

    acc = jnp.dot(w_ref[...], xc_ref[...], preferred_element_type=jnp.float32)
    y_ref[...] = acc.astype(y_ref.dtype)
    sum_ref[...] += jnp.sum(acc, axis=1, keepdims=True)
    sq_ref[...] += jnp.sum(acc * acc, axis=1, keepdims=True)


def _bn_relu_kernel(y_ref, scale_ref, shift_ref, o_ref):
    """Folded BatchNorm + ReLU: out = max(y * scale + shift, 0) (scale/shift hoisted)."""
    y = y_ref[...].astype(jnp.float32)
    o_ref[...] = jnp.maximum(y * scale_ref[...] + shift_ref[...], 0.0).astype(o_ref.dtype)


def conv_bn_relu_layer(act, weight, gamma, beta, stride, padding, *, final_layer):
    """One encoder block on a channels-first bf16 activation.

    act:        (N, C_in, L_in)   bf16
    weight:     (C_out, C_in, K)  f32  (PyTorch Conv1d layout)
    gamma/beta: (C_out,)          f32
    returns     (N, C_out, L_out) f32 if final_layer else bf16
    """
    N, C_in, L_in = act.shape
    C_out, _, K = weight.shape
    L_out = (L_in + 2 * padding - K) // stride + 1
    assert L_out > 0

    # ---- wrapper-side staging (pure layout plumbing, fused by XLA) --------
    # im2col slab: xcol[n, k*C_in + ci, l] = x_pad[n, ci, l*stride + k]
    xp = jnp.pad(act, ((0, 0), (0, 0), (padding, padding)))
    cols = [xp[:, :, k : k + stride * (L_out - 1) + 1 : stride] for k in range(K)]
    xcol = jnp.concatenate(cols, axis=1)                        # (N, K*C_in, L_out)

    Kc = K * C_in
    Kc_p = _round_up(Kc, 16)                                    # bf16 sublane packing
    Lp, tl = _pick_lane_tile(L_out)
    n_lt = Lp // tl
    # Zero padding keeps the BN statistics exact: padded rows/columns produce
    # exactly-zero conv outputs (bias is dropped), i.e. zero contribution to
    # sum and sumsq, while we still divide by the true count N*L_out.
    xcol = jnp.pad(xcol, ((0, 0), (0, Kc_p - Kc), (0, Lp - L_out))).astype(jnp.bfloat16)

    w_flat = jnp.transpose(weight, (0, 2, 1)).reshape(C_out, Kc)  # tap-major, matches xcol
    w_flat = jnp.pad(w_flat, ((0, 0), (0, Kc_p - Kc))).astype(jnp.bfloat16)

    # ---- kernel 1: fused-tap conv matmul + per-n BN partial stats ---------
    est1 = 2 * (2 * Kc_p * tl) + 2 * C_out * Kc_p + 2 * (2 * C_out * tl) + 32 * C_out
    y, psum, psq = pl.pallas_call(
        _conv_stats_kernel,
        out_shape=(
            jax.ShapeDtypeStruct((N, C_out, Lp), jnp.bfloat16),
            jax.ShapeDtypeStruct((N, C_out, 1), jnp.float32),
            jax.ShapeDtypeStruct((N, C_out, 1), jnp.float32),
        ),
        grid=(N, n_lt),
        in_specs=[
            pl.BlockSpec((None, Kc_p, tl), lambda n, l: (n, 0, l)),
            pl.BlockSpec((C_out, Kc_p), lambda n, l: (0, 0)),         # resident weights
        ],
        out_specs=(
            pl.BlockSpec((None, C_out, tl), lambda n, l: (n, 0, l)),
            pl.BlockSpec((None, C_out, 1), lambda n, l: (n, 0, 0)),   # per-n accumulators
            pl.BlockSpec((None, C_out, 1), lambda n, l: (n, 0, 0)),
        ),
        # N axis parallel (megacore-safe: each n owns its own stats blocks),
        # L-tile axis arbitrary (accumulates the per-n stats).
        compiler_params=_compiler_params(("parallel", "arbitrary"), est1),
    )(xcol, w_flat)

    # ---- BN fold, hoisted out of the per-tile path (tiny (C,1) math) ------
    count = float(N * L_out)
    mean = jnp.sum(psum, axis=0) / count                            # (C_out, 1)
    # NOTE: E[x^2] - mean^2 in f32; fine at these magnitudes.  A shifted
    # two-pass formulation would be safer for very large pre-BN activations.
    var = jnp.maximum(jnp.sum(psq, axis=0) / count - mean * mean, 0.0)
    scale = gamma.reshape(C_out, 1) * jax.lax.rsqrt(var + _EPS)
    shift = beta.reshape(C_out, 1) - mean * scale

    # ---- kernel 2: folded BN + ReLU (lane-dense FMA + max) ----------------
    out_dtype = jnp.float32 if final_layer else jnp.bfloat16
    est2 = 2 * (2 * C_out * tl) + 2 * (4 * C_out * tl) + 32 * C_out
    out = pl.pallas_call(
        _bn_relu_kernel,
        out_shape=jax.ShapeDtypeStruct((N, C_out, Lp), out_dtype),
        grid=(N, n_lt),
        in_specs=[
            pl.BlockSpec((None, C_out, tl), lambda n, l: (n, 0, l)),
            pl.BlockSpec((C_out, 1), lambda n, l: (0, 0)),
            pl.BlockSpec((C_out, 1), lambda n, l: (0, 0)),
        ],
        out_specs=pl.BlockSpec((None, C_out, tl), lambda n, l: (n, 0, l)),
        # Reuse y's HBM buffer in place when shapes/dtypes match.
        input_output_aliases={} if final_layer else {0: 0},
        compiler_params=_compiler_params(("parallel", "parallel"), est2),
    )(y, scale, shift)

    # Drop lane padding (those columns hold relu(shift), not real outputs).
    return out[:, :, :L_out]


def init_params(key, ch_in, hids, ks):
    """Deterministic synthetic parameters matching the module's __init__ shapes."""
    params = []
    c_in = ch_in
    for i, (h, k) in enumerate(zip(hids, ks)):
        kw, kb, kg, kbe = jax.random.split(jax.random.fold_in(key, i), 4)
        weight = 0.1 * jax.random.normal(kw, (h, c_in, k), dtype=jnp.float32)
        bias = 0.1 * jax.random.normal(kb, (h,), dtype=jnp.float32)   # cancelled by BN(train)
        gamma = 1.0 + 0.2 * jax.random.normal(kg, (h,), dtype=jnp.float32)
        beta = 0.1 * jax.random.normal(kbe, (h,), dtype=jnp.float32)
        params.append((weight, bias, gamma, beta))
        c_in = h
    return params


def joint_vae_encoder_forward(x_ncl, params, ss, ps):
    """Forward of the full Conv1d->BatchNorm1d(train)->ReLU stack (NCL in / NCL out)."""
    n_layers = len(params)
    act = x_ncl.astype(jnp.bfloat16)   # bf16 staging; MXU consumes bf16 anyway
    for i, ((weight, _bias, gamma, beta), s, p) in enumerate(zip(params, ss, ps)):
        # _bias intentionally unused: training-mode BatchNorm subtracts it back
        # out via the batch mean, so it cannot change the output.
        act = conv_bn_relu_layer(act, weight, gamma, beta, s, p,
                                 final_layer=(i == n_layers - 1))
    return act


def _reference_forward(x, params, ss, ps):
    """Pure-JAX reference (keeps the conv bias; BN(train) must cancel it)."""
    for (w, b, gamma, beta), s, p in zip(params, ss, ps):
        y = jax.lax.conv_general_dilated(
            x, w, window_strides=(s,), padding=[(p, p)],
            dimension_numbers=("NCH", "OIH", "NCH")) + b[None, :, None]
        mean = jnp.mean(y, axis=(0, 2), keepdims=True)
        var = jnp.var(y, axis=(0, 2), keepdims=True)   # biased, matches BN train mode
        yhat = (y - mean) * jax.lax.rsqrt(var + _EPS)
        x = jnp.maximum(yhat * gamma[None, :, None] + beta[None, :, None], 0.0)
    return x


if __name__ == "__main__":
    # Small, module-consistent config: Conv1d stack over (N, C_in, L).
    ch_in = 4
    hids = [8, 16]
    ks = [3, 3]
    ss = [1, 2]
    ps = [1, 1]
    N, L = 2, 16

    key = jax.random.PRNGKey(0)
    kx, kp = jax.random.split(key)
    x = jax.random.normal(kx, (N, ch_in, L), dtype=jnp.float32)
    params = init_params(kp, ch_in, hids, ks)

    fwd = jax.jit(lambda xx, pp: joint_vae_encoder_forward(xx, pp, ss, ps))
    out = jax.block_until_ready(fwd(x, params))

    # Expected output: (N, hids[-1], L_out) with L_out = 8 for this config.
    assert out.shape == (N, hids[-1], 8), out.shape
    assert bool(jnp.all(out >= 0.0))                       # ReLU output is non-negative
    ref = _reference_forward(x, params, ss, ps)
    max_err = float(jnp.max(jnp.abs(out - ref)))
    assert max_err < 0.1, f"max abs error vs reference: {max_err}"
    print("KERNEL_OK")
</pallas_src>

<mosaic_0001>
module attributes {stable_mosaic.version = 11 : i64} {
  func.func @_conv_stats_kernel(%arg0: i32, %arg1: i32, %arg2: memref<1x16x128xbf16, #tpu.memory_space<vmem>>, %arg3: memref<8x16xbf16, #tpu.memory_space<vmem>>, %arg4: memref<1x8x128xbf16, #tpu.memory_space<vmem>>, %arg5: memref<1x8x1xf32, #tpu.memory_space<vmem>>, %arg6: memref<1x8x1xf32, #tpu.memory_space<vmem>>) attributes {dimension_semantics = [#tpu.dimension_semantics<parallel>, #tpu.dimension_semantics<arbitrary>], iteration_bounds = array<i64: 2, 1>, scalar_prefetch = 0 : i64, scratch_operands = 0 : i64, tpu.core_type = #tpu.core_type<tc>, window_params = [{transform_indices = @transform_0, window_bounds = array<i64: 1, 16, 128>}, {pipeline_mode = #tpu.pipeline_mode<synchronous>, transform_indices = @transform_1, window_bounds = array<i64: 8, 16>}, {transform_indices = @transform_2, window_bounds = array<i64: 1, 8, 128>}, {transform_indices = @transform_3, window_bounds = array<i64: 1, 8, 1>}, {transform_indices = @transform_4, window_bounds = array<i64: 1, 8, 1>}]} {
    %c0_i32 = arith.constant 0 : i32
    %0 = arith.cmpi eq, %arg1, %c0_i32 : i32
    %1 = arith.extui %0 : i1 to i32
    %c0_i32_0 = arith.constant 0 : i32
    %2 = arith.cmpi ne, %1, %c0_i32_0 : i32
    scf.if %2 {
      %cst_22 = arith.constant 0.000000e+00 : f32
      %28 = vector.broadcast %cst_22 : f32 to vector<8x1xf32>
      %c0_23 = arith.constant 0 : index
      %c0_24 = arith.constant 0 : index
      %c0_25 = arith.constant 0 : index
      %29 = vector.load %arg5[%c0_23, %c0_24, %c0_25] : memref<1x8x1xf32, #tpu.memory_space<vmem>>, vector<1x8x1xf32>
      %30 = vector.shape_cast %29 : vector<1x8x1xf32> to vector<8x1xf32>
      %31 = vector.shape_cast %28 : vector<8x1xf32> to vector<1x8x1xf32>
      tpu.vector_store %arg5[%c0_23, %c0_24, %c0_25], %31 {strides = array<i32>} : memref<1x8x1xf32, #tpu.memory_space<vmem>>, vector<1x8x1xf32>,
      %cst_26 = arith.constant 0.000000e+00 : f32
      %32 = vector.broadcast %cst_26 : f32 to vector<8x1xf32>
      %c0_27 = arith.constant 0 : index
      %c0_28 = arith.constant 0 : index
      %c0_29 = arith.constant 0 : index
      %33 = vector.load %arg6[%c0_27, %c0_28, %c0_29] : memref<1x8x1xf32, #tpu.memory_space<vmem>>, vector<1x8x1xf32>
      %34 = vector.shape_cast %33 : vector<1x8x1xf32> to vector<8x1xf32>
      %35 = vector.shape_cast %32 : vector<8x1xf32> to vector<1x8x1xf32>
      tpu.vector_store %arg6[%c0_27, %c0_28, %c0_29], %35 {strides = array<i32>} : memref<1x8x1xf32, #tpu.memory_space<vmem>>, vector<1x8x1xf32>,
    } else {
    }
    %c0 = arith.constant 0 : index
    %c0_1 = arith.constant 0 : index
    %3 = vector.load %arg3[%c0, %c0_1] : memref<8x16xbf16, #tpu.memory_space<vmem>>, vector<8x16xbf16>
    %c0_2 = arith.constant 0 : index
    %c0_3 = arith.constant 0 : index
    %c0_4 = arith.constant 0 : index
    %4 = vector.load %arg2[%c0_2, %c0_3, %c0_4] : memref<1x16x128xbf16, #tpu.memory_space<vmem>>, vector<1x16x128xbf16>
    %5 = vector.shape_cast %4 : vector<1x16x128xbf16> to vector<16x128xbf16>
    %cst = arith.constant dense<0.000000e+00> : vector<8x128xf32>
    %6 = tpu.matmul %3, %5, %cst {dimension_numbers = #tpu.dot_dimension_numbers<[1], [0], [0], [1], [0, 0, 1, 1], [], []>} : vector<8x16xbf16>, vector<16x128xbf16>, vector<8x128xf32> -> vector<8x128xf32>
    %7 = arith.truncf %6 : vector<8x128xf32> to vector<8x128xbf16>
    %c0_5 = arith.constant 0 : index
    %c0_6 = arith.constant 0 : index
    %c0_7 = arith.constant 0 : index
    %8 = vector.load %arg4[%c0_5, %c0_6, %c0_7] : memref<1x8x128xbf16, #tpu.memory_space<vmem>>, vector<1x8x128xbf16>
    %9 = vector.shape_cast %8 : vector<1x8x128xbf16> to vector<8x128xbf16>
    %10 = vector.shape_cast %7 : vector<8x128xbf16> to vector<1x8x128xbf16>
    tpu.vector_store %arg4[%c0_5, %c0_6, %c0_7], %10 {strides = array<i32>} : memref<1x8x128xbf16, #tpu.memory_space<vmem>>, vector<1x8x128xbf16>,
    %c0_8 = arith.constant 0 : index
    %c0_9 = arith.constant 0 : index
    %c0_10 = arith.constant 0 : index
    %11 = vector.load %arg5[%c0_8, %c0_9, %c0_10] : memref<1x8x1xf32, #tpu.memory_space<vmem>>, vector<1x8x1xf32>
    %12 = vector.shape_cast %11 : vector<1x8x1xf32> to vector<8x1xf32>
    %cst_11 = arith.constant dense<0.000000e+00> : vector<8xf32>
    %13 = vector.multi_reduction <add>, %6, %cst_11 [1] : vector<8x128xf32> to vector<8xf32>
    %14 = vector.shape_cast %13 : vector<8xf32> to vector<8x1xf32>
    %15 = arith.addf %12, %14 : vector<8x1xf32>
    %c0_12 = arith.constant 0 : index
    %c0_13 = arith.constant 0 : index
    %c0_14 = arith.constant 0 : index
    %16 = vector.load %arg5[%c0_12, %c0_13, %c0_14] : memref<1x8x1xf32, #tpu.memory_space<vmem>>, vector<1x8x1xf32>
    %17 = vector.shape_cast %16 : vector<1x8x1xf32> to vector<8x1xf32>
    %18 = vector.shape_cast %15 : vector<8x1xf32> to vector<1x8x1xf32>
    tpu.vector_store %arg5[%c0_12, %c0_13, %c0_14], %18 {strides = array<i32>} : memref<1x8x1xf32, #tpu.memory_space<vmem>>, vector<1x8x1xf32>,
    %c0_15 = arith.constant 0 : index
    %c0_16 = arith.constant 0 : index
    %c0_17 = arith.constant 0 : index
    %19 = vector.load %arg6[%c0_15, %c0_16, %c0_17] : memref<1x8x1xf32, #tpu.memory_space<vmem>>, vector<1x8x1xf32>
    %20 = vector.shape_cast %19 : vector<1x8x1xf32> to vector<8x1xf32>
    %21 = arith.mulf %6, %6 : vector<8x128xf32>
    %cst_18 = arith.constant dense<0.000000e+00> : vector<8xf32>
    %22 = vector.multi_reduction <add>, %21, %cst_18 [1] : vector<8x128xf32> to vector<8xf32>
    %23 = vector.shape_cast %22 : vector<8xf32> to vector<8x1xf32>
    %24 = arith.addf %20, %23 : vector<8x1xf32>
    %c0_19 = arith.constant 0 : index
    %c0_20 = arith.constant 0 : index
    %c0_21 = arith.constant 0 : index
    %25 = vector.load %arg6[%c0_19, %c0_20, %c0_21] : memref<1x8x1xf32, #tpu.memory_space<vmem>>, vector<1x8x1xf32>
    %26 = vector.shape_cast %25 : vector<1x8x1xf32> to vector<8x1xf32>
    %27 = vector.shape_cast %24 : vector<8x1xf32> to vector<1x8x1xf32>
    tpu.vector_store %arg6[%c0_19, %c0_20, %c0_21], %27 {strides = array<i32>} : memref<1x8x1xf32, #tpu.memory_space<vmem>>, vector<1x8x1xf32>,
    return
  }
  func.func @transform_0(%arg0: i32, %arg1: i32) -> (i32, i32, i32) {
    %c0_i32 = arith.constant 0 : i32
    %c0_i32_0 = arith.constant 0 : i32
    return %arg0, %c0_i32, %arg1 : i32, i32, i32
  }
  func.func @transform_1(%arg0: i32, %arg1: i32) -> (i32, i32) {
    %c0_i32 = arith.constant 0 : i32
    %c0_i32_0 = arith.constant 0 : i32
    %c0_i32_1 = arith.constant 0 : i32
    return %c0_i32, %c0_i32_0 : i32, i32
  }
  func.func @transform_2(%arg0: i32, %arg1: i32) -> (i32, i32, i32) {
    %c0_i32 = arith.constant 0 : i32
    %c0_i32_0 = arith.constant 0 : i32
    return %arg0, %c0_i32, %arg1 : i32, i32, i32
  }
  func.func @transform_3(%arg0: i32, %arg1: i32) -> (i32, i32, i32) {
    %c0_i32 = arith.constant 0 : i32
    %c0_i32_0 = arith.constant 0 : i32
    %c0_i32_1 = arith.constant 0 : i32
    return %arg0, %c0_i32, %c0_i32_0 : i32, i32, i32
  }
  func.func @transform_4(%arg0: i32, %arg1: i32) -> (i32, i32, i32) {
    %c0_i32 = arith.constant 0 : i32
    %c0_i32_0 = arith.constant 0 : i32
    %c0_i32_1 = arith.constant 0 : i32
    return %arg0, %c0_i32, %c0_i32_0 : i32, i32, i32
  }
}

module attributes {stable_mosaic.version = 11 : i64} {
  func.func @_conv_stats_kernel(%arg0: i32, %arg1: i32, %arg2: memref<1x32x128xbf16, #tpu.memory_space<vmem>>, %arg3: memref<16x32xbf16, #tpu.memory_space<vmem>>, %arg4: memref<1x16x128xbf16, #tpu.memory_space<vmem>>, %arg5: memref<1x16x1xf32, #tpu.memory_space<vmem>>, %arg6: memref<1x16x1xf32, #tpu.memory_space<vmem>>) attributes {dimension_semantics = [#tpu.dimension_semantics<parallel>, #tpu.dimension_semantics<arbitrary>], iteration_bounds = array<i64: 2, 1>, scalar_prefetch = 0 : i64, scratch_operands = 0 : i64, tpu.core_type = #tpu.core_type<tc>, window_params = [{transform_indices = @transform_0, window_bounds = array<i64: 1, 32, 128>}, {pipeline_mode = #tpu.pipeline_mode<synchronous>, transform_indices = @transform_1, window_bounds = array<i64: 16, 32>}, {transform_indices = @transform_2, window_bounds = array<i64: 1, 16, 128>}, {transform_indices = @transform_3, window_bounds = array<i64: 1, 16, 1>}, {transform_indices = @transform_4, window_bounds = array<i64: 1, 16, 1>}]} {
    %c0_i32 = arith.constant 0 : i32
    %0 = arith.cmpi eq, %arg1, %c0_i32 : i32
    %1 = arith.extui %0 : i1 to i32
    %c0_i32_0 = arith.constant 0 : i32
    %2 = arith.cmpi ne, %1, %c0_i32_0 : i32
    scf.if %2 {
      %cst_22 = arith.constant 0.000000e+00 : f32
      %28 = vector.broadcast %cst_22 : f32 to vector<16x1xf32>
      %c0_23 = arith.constant 0 : index
      %c0_24 = arith.constant 0 : index
      %c0_25 = arith.constant 0 : index
      %29 = vector.load %arg5[%c0_23, %c0_24, %c0_25] : memref<1x16x1xf32, #tpu.memory_space<vmem>>, vector<1x16x1xf32>
      %30 = vector.shape_cast %29 : vector<1x16x1xf32> to vector<16x1xf32>
      %31 = vector.shape_cast %28 : vector<16x1xf32> to vector<1x16x1xf32>
      tpu.vector_store %arg5[%c0_23, %c0_24, %c0_25], %31 {strides = array<i32>} : memref<1x16x1xf32, #tpu.memory_space<vmem>>, vector<1x16x1xf32>,
      %cst_26 = arith.constant 0.000000e+00 : f32
      %32 = vector.broadcast %cst_26 : f32 to vector<16x1xf32>
      %c0_27 = arith.constant 0 : index
      %c0_28 = arith.constant 0 : index
      %c0_29 = arith.constant 0 : index
      %33 = vector.load %arg6[%c0_27, %c0_28, %c0_29] : memref<1x16x1xf32, #tpu.memory_space<vmem>>, vector<1x16x1xf32>
      %34 = vector.shape_cast %33 : vector<1x16x1xf32> to vector<16x1xf32>
      %35 = vector.shape_cast %32 : vector<16x1xf32> to vector<1x16x1xf32>
      tpu.vector_store %arg6[%c0_27, %c0_28, %c0_29], %35 {strides = array<i32>} : memref<1x16x1xf32, #tpu.memory_space<vmem>>, vector<1x16x1xf32>,
    } else {
    }
    %c0 = arith.constant 0 : index
    %c0_1 = arith.constant 0 : index
    %3 = vector.load %arg3[%c0, %c0_1] : memref<16x32xbf16, #tpu.memory_space<vmem>>, vector<16x32xbf16>
    %c0_2 = arith.constant 0 : index
    %c0_3 = arith.constant 0 : index
    %c0_4 = arith.constant 0 : index
    %4 = vector.load %arg2[%c0_2, %c0_3, %c0_4] : memref<1x32x128xbf16, #tpu.memory_space<vmem>>, vector<1x32x128xbf16>
    %5 = vector.shape_cast %4 : vector<1x32x128xbf16> to vector<32x128xbf16>
    %cst = arith.constant dense<0.000000e+00> : vector<16x128xf32>
    %6 = tpu.matmul %3, %5, %cst {dimension_numbers = #tpu.dot_dimension_numbers<[1], [0], [0], [1], [0, 0, 1, 1], [], []>} : vector<16x32xbf16>, vector<32x128xbf16>, vector<16x128xf32> -> vector<16x128xf32>
    %7 = arith.truncf %6 : vector<16x128xf32> to vector<16x128xbf16>
    %c0_5 = arith.constant 0 : index
    %c0_6 = arith.constant 0 : index
    %c0_7 = arith.constant 0 : index
    %8 = vector.load %arg4[%c0_5, %c0_6, %c0_7] : memref<1x16x128xbf16, #tpu.memory_space<vmem>>, vector<1x16x128xbf16>
    %9 = vector.shape_cast %8 : vector<1x16x128xbf16> to vector<16x128xbf16>
    %10 = vector.shape_cast %7 : vector<16x128xbf16> to vector<1x16x128xbf16>
    tpu.vector_store %arg4[%c0_5, %c0_6, %c0_7], %10 {strides = array<i32>} : memref<1x16x128xbf16, #tpu.memory_space<vmem>>, vector<1x16x128xbf16>,
    %c0_8 = arith.constant 0 : index
    %c0_9 = arith.constant 0 : index
    %c0_10 = arith.constant 0 : index
    %11 = vector.load %arg5[%c0_8, %c0_9, %c0_10] : memref<1x16x1xf32, #tpu.memory_space<vmem>>, vector<1x16x1xf32>
    %12 = vector.shape_cast %11 : vector<1x16x1xf32> to vector<16x1xf32>
    %cst_11 = arith.constant dense<0.000000e+00> : vector<16xf32>
    %13 = vector.multi_reduction <add>, %6, %cst_11 [1] : vector<16x128xf32> to vector<16xf32>
    %14 = vector.shape_cast %13 : vector<16xf32> to vector<16x1xf32>
    %15 = arith.addf %12, %14 : vector<16x1xf32>
    %c0_12 = arith.constant 0 : index
    %c0_13 = arith.constant 0 : index
    %c0_14 = arith.constant 0 : index
    %16 = vector.load %arg5[%c0_12, %c0_13, %c0_14] : memref<1x16x1xf32, #tpu.memory_space<vmem>>, vector<1x16x1xf32>
    %17 = vector.shape_cast %16 : vector<1x16x1xf32> to vector<16x1xf32>
    %18 = vector.shape_cast %15 : vector<16x1xf32> to vector<1x16x1xf32>
    tpu.vector_store %arg5[%c0_12, %c0_13, %c0_14], %18 {strides = array<i32>} : memref<1x16x1xf32, #tpu.memory_space<vmem>>, vector<1x16x1xf32>,
    %c0_15 = arith.constant 0 : index
    %c0_16 = arith.constant 0 : index
    %c0_17 = arith.constant 0 : index
    %19 = vector.load %arg6[%c0_15, %c0_16, %c0_17] : memref<1x16x1xf32, #tpu.memory_space<vmem>>, vector<1x16x1xf32>
    %20 = vector.shape_cast %19 : vector<1x16x1xf32> to vector<16x1xf32>
    %21 = arith.mulf %6, %6 : vector<16x128xf32>
    %cst_18 = arith.constant dense<0.000000e+00> : vector<16xf32>
    %22 = vector.multi_reduction <add>, %21, %cst_18 [1] : vector<16x128xf32> to vector<16xf32>
    %23 = vector.shape_cast %22 : vector<16xf32> to vector<16x1xf32>
    %24 = arith.addf %20, %23 : vector<16x1xf32>
    %c0_19 = arith.constant 0 : index
    %c0_20 = arith.constant 0 : index
    %c0_21 = arith.constant 0 : index
    %25 = vector.load %arg6[%c0_19, %c0_20, %c0_21] : memref<1x16x1xf32, #tpu.memory_space<vmem>>, vector<1x16x1xf32>
    %26 = vector.shape_cast %25 : vector<1x16x1xf32> to vector<16x1xf32>
    %27 = vector.shape_cast %24 : vector<16x1xf32> to vector<1x16x1xf32>
    tpu.vector_store %arg6[%c0_19, %c0_20, %c0_21], %27 {strides = array<i32>} : memref<1x16x1xf32, #tpu.memory_space<vmem>>, vector<1x16x1xf32>,
    return
  }
  func.func @transform_0(%arg0: i32, %arg1: i32) -> (i32, i32, i32) {
    %c0_i32 = arith.constant 0 : i32
    %c0_i32_0 = arith.constant 0 : i32
    return %arg0, %c0_i32, %arg1 : i32, i32, i32
  }
  func.func @transform_1(%arg0: i32, %arg1: i32) -> (i32, i32) {
    %c0_i32 = arith.constant 0 : i32
    %c0_i32_0 = arith.constant 0 : i32
    %c0_i32_1 = arith.constant 0 : i32
    return %c0_i32, %c0_i32_0 : i32, i32
  }
  func.func @transform_2(%arg0: i32, %arg1: i32) -> (i32, i32, i32) {
    %c0_i32 = arith.constant 0 : i32
    %c0_i32_0 = arith.constant 0 : i32
    return %arg0, %c0_i32, %arg1 : i32, i32, i32
  }
  func.func @transform_3(%arg0: i32, %arg1: i32) -> (i32, i32, i32) {
    %c0_i32 = arith.constant 0 : i32
    %c0_i32_0 = arith.constant 0 : i32
    %c0_i32_1 = arith.constant 0 : i32
    return %arg0, %c0_i32, %c0_i32_0 : i32, i32, i32
  }
  func.func @transform_4(%arg0: i32, %arg1: i32) -> (i32, i32, i32) {
    %c0_i32 = arith.constant 0 : i32
    %c0_i32_0 = arith.constant 0 : i32
    %c0_i32_1 = arith.constant 0 : i32
    return %arg0, %c0_i32, %c0_i32_0 : i32, i32, i32
  }
}

module attributes {stable_mosaic.version = 11 : i64} {
  func.func @_bn_relu_kernel(%arg0: i32, %arg1: i32, %arg2: memref<1x8x128xbf16, #tpu.memory_space<vmem>>, %arg3: memref<8x1xf32, #tpu.memory_space<vmem>>, %arg4: memref<8x1xf32, #tpu.memory_space<vmem>>, %arg5: memref<1x8x128xbf16, #tpu.memory_space<vmem>>) attributes {dimension_semantics = [#tpu.dimension_semantics<parallel>, #tpu.dimension_semantics<parallel>], iteration_bounds = array<i64: 2, 1>, scalar_prefetch = 0 : i64, scratch_operands = 0 : i64, tpu.core_type = #tpu.core_type<tc>, window_params = [{transform_indices = @transform_0, window_bounds = array<i64: 1, 8, 128>}, {pipeline_mode = #tpu.pipeline_mode<synchronous>, transform_indices = @transform_1, window_bounds = array<i64: 8, 1>}, {pipeline_mode = #tpu.pipeline_mode<synchronous>, transform_indices = @transform_2, window_bounds = array<i64: 8, 1>}, {transform_indices = @transform_3, window_bounds = array<i64: 1, 8, 128>}]} {
    %c0 = arith.constant 0 : index
    %c0_0 = arith.constant 0 : index
    %c0_1 = arith.constant 0 : index
    %0 = vector.load %arg2[%c0, %c0_0, %c0_1] : memref<1x8x128xbf16, #tpu.memory_space<vmem>>, vector<1x8x128xbf16>
    %1 = vector.shape_cast %0 : vector<1x8x128xbf16> to vector<8x128xbf16>
    %2 = arith.extf %1 : vector<8x128xbf16> to vector<8x128xf32>
    %c0_2 = arith.constant 0 : index
    %c0_3 = arith.constant 0 : index
    %3 = vector.load %arg3[%c0_2, %c0_3] : memref<8x1xf32, #tpu.memory_space<vmem>>, vector<8x1xf32>
    %4 = vector.broadcast %3 : vector<8x1xf32> to vector<8x128xf32>
    %5 = arith.mulf %2, %4 : vector<8x128xf32>
    %c0_4 = arith.constant 0 : index
    %c0_5 = arith.constant 0 : index
    %6 = vector.load %arg4[%c0_4, %c0_5] : memref<8x1xf32, #tpu.memory_space<vmem>>, vector<8x1xf32>
    %7 = vector.broadcast %6 : vector<8x1xf32> to vector<8x128xf32>
    %8 = arith.addf %5, %7 : vector<8x128xf32>
    %cst = arith.constant 0.000000e+00 : f32
    %9 = vector.broadcast %cst : f32 to vector<8x128xf32>
    %10 = arith.maximumf %8, %9 : vector<8x128xf32>
    %11 = arith.truncf %10 : vector<8x128xf32> to vector<8x128xbf16>
    %c0_6 = arith.constant 0 : index
    %c0_7 = arith.constant 0 : index
    %c0_8 = arith.constant 0 : index
    %12 = vector.load %arg5[%c0_6, %c0_7, %c0_8] : memref<1x8x128xbf16, #tpu.memory_space<vmem>>, vector<1x8x128xbf16>
    %13 = vector.shape_cast %12 : vector<1x8x128xbf16> to vector<8x128xbf16>
    %14 = vector.shape_cast %11 : vector<8x128xbf16> to vector<1x8x128xbf16>
    tpu.vector_store %arg5[%c0_6, %c0_7, %c0_8], %14 {strides = array<i32>} : memref<1x8x128xbf16, #tpu.memory_space<vmem>>, vector<1x8x128xbf16>,
    return
  }
  func.func @transform_0(%arg0: i32, %arg1: i32) -> (i32, i32, i32) {
    %c0_i32 = arith.constant 0 : i32
    %c0_i32_0 = arith.constant 0 : i32
    return %arg0, %c0_i32, %arg1 : i32, i32, i32
  }
  func.func @transform_1(%arg0: i32, %arg1: i32) -> (i32, i32) {
    %c0_i32 = arith.constant 0 : i32
    %c0_i32_0 = arith.constant 0 : i32
    %c0_i32_1 = arith.constant 0 : i32
    return %c0_i32, %c0_i32_0 : i32, i32
  }
  func.func @transform_2(%arg0: i32, %arg1: i32) -> (i32, i32) {
    %c0_i32 = arith.constant 0 : i32
    %c0_i32_0 = arith.constant 0 : i32
    %c0_i32_1 = arith.constant 0 : i32
    return %c0_i32, %c0_i32_0 : i32, i32
  }
  func.func @transform_3(%arg0: i32, %arg1: i32) -> (i32, i32, i32) {
    %c0_i32 = arith.constant 0 : i32
    %c0_i32_0 = arith.constant 0 : i32
    return %arg0, %c0_i32, %arg1 : i32, i32, i32
  }
}

module attributes {stable_mosaic.version = 11 : i64} {
  func.func @_bn_relu_kernel(%arg0: i32, %arg1: i32, %arg2: memref<1x16x128xbf16, #tpu.memory_space<vmem>>, %arg3: memref<16x1xf32, #tpu.memory_space<vmem>>, %arg4: memref<16x1xf32, #tpu.memory_space<vmem>>, %arg5: memref<1x16x128xf32, #tpu.memory_space<vmem>>) attributes {dimension_semantics = [#tpu.dimension_semantics<parallel>, #tpu.dimension_semantics<parallel>], iteration_bounds = array<i64: 2, 1>, scalar_prefetch = 0 : i64, scratch_operands = 0 : i64, tpu.core_type = #tpu.core_type<tc>, window_params = [{transform_indices = @transform_0, window_bounds = array<i64: 1, 16, 128>}, {pipeline_mode = #tpu.pipeline_mode<synchronous>, transform_indices = @transform_1, window_bounds = array<i64: 16, 1>}, {pipeline_mode = #tpu.pipeline_mode<synchronous>, transform_indices = @transform_2, window_bounds = array<i64: 16, 1>}, {transform_indices = @transform_3, window_bounds = array<i64: 1, 16, 128>}]} {
    %c0 = arith.constant 0 : index
    %c0_0 = arith.constant 0 : index
    %c0_1 = arith.constant 0 : index
    %0 = vector.load %arg2[%c0, %c0_0, %c0_1] : memref<1x16x128xbf16, #tpu.memory_space<vmem>>, vector<1x16x128xbf16>
    %1 = vector.shape_cast %0 : vector<1x16x128xbf16> to vector<16x128xbf16>
    %2 = arith.extf %1 : vector<16x128xbf16> to vector<16x128xf32>
    %c0_2 = arith.constant 0 : index
    %c0_3 = arith.constant 0 : index
    %3 = vector.load %arg3[%c0_2, %c0_3] : memref<16x1xf32, #tpu.memory_space<vmem>>, vector<16x1xf32>
    %4 = vector.broadcast %3 : vector<16x1xf32> to vector<16x128xf32>
    %5 = arith.mulf %2, %4 : vector<16x128xf32>
    %c0_4 = arith.constant 0 : index
    %c0_5 = arith.constant 0 : index
    %6 = vector.load %arg4[%c0_4, %c0_5] : memref<16x1xf32, #tpu.memory_space<vmem>>, vector<16x1xf32>
    %7 = vector.broadcast %6 : vector<16x1xf32> to vector<16x128xf32>
    %8 = arith.addf %5, %7 : vector<16x128xf32>
    %cst = arith.constant 0.000000e+00 : f32
    %9 = vector.broadcast %cst : f32 to vector<16x128xf32>
    %10 = arith.maximumf %8, %9 : vector<16x128xf32>
    %c0_6 = arith.constant 0 : index
    %c0_7 = arith.constant 0 : index
    %c0_8 = arith.constant 0 : index
    %11 = vector.load %arg5[%c0_6, %c0_7, %c0_8] : memref<1x16x128xf32, #tpu.memory_space<vmem>>, vector<1x16x128xf32>
    %12 = vector.shape_cast %11 : vector<1x16x128xf32> to vector<16x128xf32>
    %13 = vector.shape_cast %10 : vector<16x128xf32> to vector<1x16x128xf32>
    tpu.vector_store %arg5[%c0_6, %c0_7, %c0_8], %13 {strides = array<i32>} : memref<1x16x128xf32, #tpu.memory_space<vmem>>, vector<1x16x128xf32>,
    return
  }
  func.func @transform_0(%arg0: i32, %arg1: i32) -> (i32, i32, i32) {
    %c0_i32 = arith.constant 0 : i32
    %c0_i32_0 = arith.constant 0 : i32
    return %arg0, %c0_i32, %arg1 : i32, i32, i32
  }
  func.func @transform_1(%arg0: i32, %arg1: i32) -> (i32, i32) {
    %c0_i32 = arith.constant 0 : i32
    %c0_i32_0 = arith.constant 0 : i32
    %c0_i32_1 = arith.constant 0 : i32
    return %c0_i32, %c0_i32_0 : i32, i32
  }
  func.func @transform_2(%arg0: i32, %arg1: i32) -> (i32, i32) {
    %c0_i32 = arith.constant 0 : i32
    %c0_i32_0 = arith.constant 0 : i32
    %c0_i32_1 = arith.constant 0 : i32
    return %c0_i32, %c0_i32_0 : i32, i32
  }
  func.func @transform_3(%arg0: i32, %arg1: i32) -> (i32, i32, i32) {
    %c0_i32 = arith.constant 0 : i32
    %c0_i32_0 = arith.constant 0 : i32
    return %arg0, %c0_i32, %arg1 : i32, i32, i32
  }
}

</mosaic_0001>

<llo_original>
// kernel: _lambda_.4
$region0: #{_lambda_.4}
  #allocation0 [shape = 'u32[]', space=smem, size = 0x4, offset = 0x4, fixed_abs, tag = 'smem constant byte address 0x4 - core index']
  #allocation1 [shape = 'u32[144,128]{1,0:T(1,128)}', space=vmem, size = 0x12000, scoped, tag = 'internal scratch']
  %s0 = inlined_call_operand.vmem [shape: bf16[2,16,128], index: 0, kind: input, shape index: {}]
  %s1 = inlined_call_operand.vmem [shape: bf16[8,16], index: 1, kind: input, shape index: {}]
  %s2 = inlined_call_operand.vmem [shape: bf16[2,8,128], index: 2, kind: output, shape index: {0}]
  %s3 = inlined_call_operand.vmem [shape: f32[2,8,1], index: 3, kind: output, shape index: {1}]
  %s4 = inlined_call_operand.vmem [shape: f32[2,8,1], index: 4, kind: output, shape index: {2}]
  %5 = xla_tuple %s2, %s3, %s4
  %s6 = sld [smem:[#allocation0]]
  $region61: #{_lambda_.4} parent=0
    _
  %s8 = ssub.s32 1, %s6
  %s9 = scalar_select 0, %s8, %s6
  loop: start=0, step=1, limit=4
  $region2: #{_lambda_.4} parent=0 // loop_pre_header
    _
  $region3: #{_lambda_.4} parent=0 // loop_header
    %s11 = sphi 0, %s15
    %p12 = scmp.ge.s32.totalorder %s11, 4
    %s18 = sphi 0, %s30
    %s19 = sphi 0, %s26
    %s20 = sphi 0, %s18
    %s21 = sphi 0, %s19
    %s22 = sphi 0, %s20
    %s23 = sphi 0, %s21
    %s35 = sphi 0, %s37
    %s38 = sphi 0, %s35
    %s39 = sphi 0, %s38
    %s55 = sphi 0, %s39
    %s59 = sphi 0, %s59
    %s61 = sphi 0, %s59
    %s62 = sphi 0, %s61
    %s76 = sphi 0, %s62
    %s84 = sphi 0, %s86
    %s87 = sphi 0, %s84
    %s88 = sphi 0, %s87
    %s104 = sphi 0, %s88
    %s110 = sphi 0, %s112
    %s113 = sphi 0, %s110
    %s114 = sphi 0, %s113
    %s130 = sphi 0, %s114
    %s136 = sphi 0, %s138
    %s139 = sphi 0, %s136
    %s140 = sphi 0, %s139
    %s156 = sphi 0, %s140
  $region4: #{_lambda_.4} parent=0 // loop_header_branch
    %14 = sbr.rel (%p12) target = $region8
  $region5: #{_lambda_.4} parent=0 // loop_body
    %s16 = ssub.s32 %s11, 1
    %s17 = ssub.s32 %s11, 2
    %s24 = sadd.s32 1, %s19
    %p25 = scmp.ge.s32.totalorder %s24, 1
    %s26 = scalar_select %p25, 0, %s24
    %s27 = sadd.s32 1, %s18
    %s28 = scalar_select %p25, %s27, %s18
    %p29 = scmp.ge.s32.totalorder %s28, 2
    %s30 = scalar_select %p29, 0, %s28
    %s31 = ssub.s32 %s18, %s30
    %s32 = ssub.s32 %s19, %s26
    %s33 = sor.u32 %s31, %s32
    %p34 = scmp.eq.s32.totalorder %s33, 0
    %s36 = sadd.s32 %s35, 1
    %s37 = scalar_select %p34, %s35, %s36
    %p40 = pneg %p34
    %p41 = scmp.eq.s32.totalorder %s11, 1
    %p42 = por %p40, %p41
    %p43 = scmp.ne.s32.totalorder %s35, %s38
    %p44 = scmp.eq.s32.totalorder %s11, 0
    %p45 = por %p43, %p44
    %p46 = scmp.ne.s32.totalorder %s35, %s38
    %p47 = scmp.eq.s32.totalorder %s16, 1
    %p48 = por %p46, %p47
    %p49 = scmp.ne.s32.totalorder %s38, %s39
    %p50 = scmp.eq.s32.totalorder %s16, 0
    %p51 = por %p49, %p50
    %p52 = scmp.ne.s32.totalorder %s38, %s39
    %p53 = scmp.eq.s32.totalorder %s17, 1
    %p54 = por %p52, %p53
    %p56 = scmp.ne.s32.totalorder %s39, %s55
    %p57 = scmp.eq.s32.totalorder %s17, 0
    %p58 = por %p56, %p57
    %s60 = sadd.s32 %s59, 1
    %p63 = scmp.eq.s32.totalorder %s11, 1
    %p64 = scmp.ne.s32.totalorder %s59, %s61
    %p65 = scmp.eq.s32.totalorder %s11, 0
    %p66 = por %p64, %p65
    %p67 = scmp.ne.s32.totalorder %s59, %s61
    %p68 = scmp.eq.s32.totalorder %s16, 1
    %p69 = por %p67, %p68
    %p70 = scmp.ne.s32.totalorder %s61, %s62
    %p71 = scmp.eq.s32.totalorder %s16, 0
    %p72 = por %p70, %p71
    %p73 = scmp.ne.s32.totalorder %s61, %s62
    %p74 = scmp.eq.s32.totalorder %s17, 1
    %p75 = por %p73, %p74
    %p77 = scmp.ne.s32.totalorder %s62, %s76
    %p78 = scmp.eq.s32.totalorder %s17, 0
    %p79 = por %p77, %p78
    %s80 = ssub.s32 %s18, %s30
    %s81 = ssub.s32 %s19, %s26
    %s82 = sor.u32 %s80, %s81
    %p83 = scmp.eq.s32.totalorder %s82, 0
    %s85 = sadd.s32 %s84, 1
    %s86 = scalar_select %p83, %s84, %s85
    %p89 = pneg %p83
    %p90 = scmp.eq.s32.totalorder %s11, 1
    %p91 = por %p89, %p90
    %p92 = scmp.ne.s32.totalorder %s84, %s87
    %p93 = scmp.eq.s32.totalorder %s11, 0
    %p94 = por %p92, %p93
    %p95 = scmp.ne.s32.totalorder %s84, %s87
    %p96 = scmp.eq.s32.totalorder %s16, 1
    %p97 = por %p95, %p96
    %p98 = scmp.ne.s32.totalorder %s87, %s88
    %p99 = scmp.eq.s32.totalorder %s16, 0
    %p100 = por %p98, %p99
    %p101 = scmp.ne.s32.totalorder %s87, %s88
    %p102 = scmp.eq.s32.totalorder %s17, 1
    %p103 = por %p101, %p102
    %p105 = scmp.ne.s32.totalorder %s88, %s104
    %p106 = scmp.eq.s32.totalorder %s17, 0
    %p107 = por %p105, %p106
    %s108 = ssub.s32 %s18, %s30
    %p109 = scmp.eq.s32.totalorder %s108, 0
    %s111 = sadd.s32 %s110, 1
    %s112 = scalar_select %p109, %s110, %s111
    %p115 = pneg %p109
    %p116 = scmp.eq.s32.totalorder %s11, 1
    %p117 = por %p115, %p116
    %p118 = scmp.ne.s32.totalorder %s110, %s113
    %p119 = scmp.eq.s32.totalorder %s11, 0
    %p120 = por %p118, %p119
    %p121 = scmp.ne.s32.totalorder %s110, %s113
    %p122 = scmp.eq.s32.totalorder %s16, 1
    %p123 = por %p121, %p122
    %p124 = scmp.ne.s32.totalorder %s113, %s114
    %p125 = scmp.eq.s32.totalorder %s16, 0
    %p126 = por %p124, %p125
    %p127 = scmp.ne.s32.totalorder %s113, %s114
    %p128 = scmp.eq.s32.totalorder %s17, 1
    %p129 = por %p127, %p128
    %p131 = scmp.ne.s32.totalorder %s114, %s130
    %p132 = scmp.eq.s32.totalorder %s17, 0
    %p133 = por %p131, %p132
    %s134 = ssub.s32 %s18, %s30
    %p135 = scmp.eq.s32.totalorder %s134, 0
    %s137 = sadd.s32 %s136, 1
    %s138 = scalar_select %p135, %s136, %s137
    %p141 = pneg %p135
    %p142 = scmp.eq.s32.totalorder %s11, 1
    %p143 = por %p141, %p142
    %p144 = scmp.ne.s32.totalorder %s136, %s139
    %p145 = scmp.eq.s32.totalorder %s11, 0
    %p146 = por %p144, %p145
    %p147 = scmp.ne.s32.totalorder %s136, %s139
    %p148 = scmp.eq.s32.totalorder %s16, 1
    %p149 = por %p147, %p148
    %p150 = scmp.ne.s32.totalorder %s139, %s140
    %p151 = scmp.eq.s32.totalorder %s16, 0
    %p152 = por %p150, %p151
    %p153 = scmp.ne.s32.totalorder %s139, %s140
    %p154 = scmp.eq.s32.totalorder %s17, 1
    %p155 = por %p153, %p154
    %p157 = scmp.ne.s32.totalorder %s140, %s156
    %p158 = scmp.eq.s32.totalorder %s17, 0
    %p159 = por %p157, %p158
    %p160 = scmp.le.s32.totalorder 1, %s11
    %p161 = scmp.lt.s32.totalorder %s11, 3
    %p162 = pnand %p160, %p161
    %p163 = pneg %p162
    // Predicated region
    $region9: #{_lambda_.4} parent=5 // pred_check
      _
    $region10: #{_lambda_.4} parent=5 // pred_check_branch
      %165 = sbr.rel (%p162) target = $region12
    $region11: #{_lambda_.4} parent=5 // pred_region
      %s166 = ssub.s32 %s11, 1
      // Predicated region
      $region13: #{_lambda_.4} parent=11 // pred_check
        %p167 = pneg %p72
      $region14: #{_lambda_.4} parent=11 // pred_check_branch
        %169 = sbr.rel (%p167) target = $region16
      $region15: #{_lambda_.4} parent=11 // pred_region
        _
      $region16: #{_lambda_.4} parent=11 // pred_fallthru
        _
    $region12: #{_lambda_.4} parent=5 // pred_fallthru
      _
    %p170 = scmp.lt.s32.totalorder %s11, 2
    // Predicated region
    $region17: #{_lambda_.4} parent=5 // pred_check
      %p171 = pneg %p170
    $region18: #{_lambda_.4} parent=5 // pred_check_branch
      %173 = sbr.rel (%p171) target = $region20
    $region19: #{_lambda_.4} parent=5 // pred_region
      // Predicated region
      $region21: #{_lambda_.4} parent=19 // pred_check
        %p174 = pneg %p45
      $region22: #{_lambda_.4} parent=19 // pred_check_branch
        %176 = sbr.rel (%p174) target = $region24
      $region23: #{_lambda_.4} parent=19 // pred_region
        %p177 = scmp.lt.s32.totalorder %s18, 1
        %s178 = scalar_select %p177, %s18, 1
        %p179 = scmp.lt.s32.totalorder %s19, 0
        %s180 = scalar_select %p179, %s19, 0
        %s181 = smul.addr %s178, 2
        %s182 = sadd.s32 %s180, %s181
        %s183 = smul.addr %s182, 4
        %s184 = scalar_lea.vmem %s0, %s183
      $region24: #{_lambda_.4} parent=19 // pred_fallthru
        _
    $region20: #{_lambda_.4} parent=5 // pred_fallthru
      _
    %p185 = scmp.le.s32.totalorder 1, %s11
    %p186 = scmp.lt.s32.totalorder %s11, 3
    %p187 = pnand %p185, %p186
    %p188 = pneg %p187
    // Predicated region
    $region25: #{_lambda_.4} parent=5 // pred_check
      _
    $region26: #{_lambda_.4} parent=5 // pred_check_branch
      %190 = sbr.rel (%p187) target = $region28
    $region27: #{_lambda_.4} parent=5 // pred_region
      %s191 = ssub.s32 %s11, 1
      %p192 = scmp.lt.s32.totalorder %s20, 1
      %s193 = scalar_select %p192, %s20, 1
      %p194 = scmp.lt.s32.totalorder %s21, 0
      %s195 = scalar_select %p194, %s21, 0
      %s196 = smul.addr %s193, 2
      %s197 = sadd.s32 %s195, %s196
      %s198 = smul.addr %s197, 4
      %s199 = scalar_lea.vmem %s0, %s198
      %p200 = pneg %p51
      %p201 = pneg %p48
      %p202 = pneg %p72
      %p203 = pneg %p69
      %p204 = pneg %p100
      %p205 = pneg %p97
      %p206 = scmp.lt.s32.totalorder %s20, 1
      %s207 = scalar_select %p206, %s20, 1
      %p208 = scmp.lt.s32.totalorder %s21, 0
      %s209 = scalar_select %p208, %s21, 0
      %s210 = sadd.s32 %s209, %s207
      %s211 = smul.addr %s210, 4
      %s212 = scalar_lea.vmem %s2, %s211
      %p213 = pneg %p126
      %p214 = pneg %p123
      %p215 = scmp.lt.s32.totalorder %s20, 1
      %s216 = scalar_select %p215, %s20, 1
      %s217 = smul.addr %s216, 8
      %s218 = scalar_lea.vmem %s3, %s217
      %p219 = pneg %p152
      %p220 = pneg %p149
      %p221 = scmp.lt.s32.totalorder %s20, 1
      %s222 = scalar_select %p221, %s20, 1
      %s223 = smul.addr %s222, 8
      %s224 = scalar_lea.vmem %s4, %s223
      %p225 = scmp.lt.s32.totalorder %s20, 1
      %s226 = scalar_select %p225, %s20, 1
      %p227 = scmp.lt.s32.totalorder %s21, 0
      %s228 = scalar_select %p227, %s21, 0
      %s229 = smul.addr %s226, 2
      %s230 = sadd.s32 %s228, %s229
      %s231 = smul.addr %s230, 4
      %s232 = scalar_lea.vmem %s0, %s231
      %p233 = scmp.lt.s32.totalorder %s20, 1
      %s234 = scalar_select %p233, %s20, 1
      %p235 = scmp.lt.s32.totalorder %s21, 0
      %s236 = scalar_select %p235, %s21, 0
      %s237 = sadd.s32 %s236, %s234
      %s238 = smul.addr %s237, 4
      %s239 = scalar_lea.vmem %s2, %s238
      %p240 = scmp.lt.s32.totalorder %s20, 1
      %s241 = scalar_select %p240, %s20, 1
      %s242 = smul.addr %s241, 8
      %s243 = scalar_lea.vmem %s3, %s242
      %p244 = scmp.lt.s32.totalorder %s20, 1
      %s245 = scalar_select %p244, %s20, 1
      %s246 = smul.addr %s245, 8
      %s247 = scalar_lea.vmem %s4, %s246
      %p249 = scmp.eq.s32.totalorder %s21, 0
      // Predicated region
      $region29: #{_lambda_.4} parent=27 // pred_check
        %p250 = pneg %p249
      $region30: #{_lambda_.4} parent=27 // pred_check_branch
        %252 = sbr.rel (%p250) target = $region32
      $region31: #{_lambda_.4} parent=27 // pred_region
        %vm253 = vcmask 7168
        %254 = vst.msk [vmem:[%s243] sm:$0xff] %vm253, 0.0
        %255 = vst.msk [vmem:[%s247] sm:$0xff] %vm253, 0.0
      $region32: #{_lambda_.4} parent=27 // pred_fallthru
        _
      %v256 = vld [vmem:[%s1] sm:$0xf]
      %v257 = vld [vmem:[%s232] sm:$0xf]
      %v258 = vld [vmem:[%s232 + $0x4] sm:$0xf]
      %v261 = vunpack.c.l.b16 %v257
      %v262 = vunpack.c.l.b16 %v258
      %v263 = vpack.c.b16 %v262, %v261
      %vm265 = vcmask 130048
      %v267 = vsel %vm265, %v256, 0
      %269 = vmatprep.subr.bf16.mxu0 0
      %270 = vmatpush1.bf16.msra.mxu0 %v263
      %271 = vmatprep.subr.bf16.mxu0 0
      %272 = vmatpush1.bf16.msra.mxu0 0
      %273 = vmatprep.subr.bf16.mxu0 0
      %274 = vmatpush1.bf16.msra.mxu0 0
      %275 = vmatprep.subr.bf16.mxu0 0
      %276 = vmatpush1.bf16.msra.mxu0 0
      %277 = vmatprep.subr.bf16.mxu0 0
      %278 = vmatpush1.bf16.msra.mxu0 0
      %279 = vmatprep.subr.bf16.mxu0 0
      %280 = vmatpush1.bf16.msra.mxu0 0
      %281 = vmatprep.subr.bf16.mxu0 0
      %282 = vmatpush1.bf16.msra.mxu0 0
      %283 = vmatprep.subr.bf16.mxu0 0
      %284 = vmatpush1.bf16.msra.mxu0 0
      %285 = vmatprep.subr.bf16.mxu0 0
      %286 = vmatpush1.bf16.msra.mxu0 0
      %287 = vmatprep.subr.bf16.mxu0 0
      %288 = vmatpush1.bf16.msra.mxu0 0
      %289 = vmatprep.subr.bf16.mxu0 0
      %290 = vmatpush1.bf16.msra.mxu0 0
      %291 = vmatprep.subr.bf16.mxu0 0
      %292 = vmatpush1.bf16.msra.mxu0 0
      %293 = vmatprep.subr.bf16.mxu0 0
      %294 = vmatpush1.bf16.msra.mxu0 0
      %295 = vmatprep.subr.bf16.mxu0 0
      %296 = vmatpush1.bf16.msra.mxu0 0
      %297 = vmatprep.subr.bf16.mxu0 0
      %298 = vmatpush1.bf16.msra.mxu0 0
      %299 = vmatprep.subr.bf16.mxu0 0
      %300 = vmatpush1.bf16.msra.mxu0 0
      %301 = vmatprep.mubr.bf16.mxu0 0
      %302 = vmatmul.mubr.bf16.gmra.mrb[0].mxu0 %v267
      %v303 = vpop.f32.mrb[0].mxu0
      %v304 = vadd.f32 0.0, %v303
      %v305 = vpop.f32.mrb[0].mxu0
      %v306 = vpop.f32.mrb[0].mxu0
      %v307 = vpop.f32.mrb[0].mxu0
      %308 = vdwg.mxu0
      %v309 = vpack.c.bf16 %v304, %v304
      %310 = vst [vmem:[%s239] sm:$0xf] %v309
      %v311 = vld [vmem:[%s243] sm:$0xff]
      %312 = vadd.xlane.f32.xlu0 %v304
      %v313 = vpop.xlane.xlu0 %312
      %v314 = vadd.f32 %v311, %v313
      %vm315 = vcmask 7168
      %316 = vst.msk [vmem:[%s243] sm:$0xff] %vm315, %v314
      %v317 = vld [vmem:[%s247] sm:$0xff]
      %v318 = vmul.f32 %v304, %v304
      %319 = vadd.xlane.f32.xlu0 %v318
      %v320 = vpop.xlane.xlu0 %319
      %v321 = vadd.f32 %v317, %v320
      %322 = vst.msk [vmem:[%s247] sm:$0xff] %vm315, %v321
      %p323 = scmp.lt.s32.totalorder %s20, 1
      %s324 = scalar_select %p323, %s20, 1
      %p325 = scmp.lt.s32.totalorder %s21, 0
      %s326 = scalar_select %p325, %s21, 0
      %s327 = sadd.s32 %s326, %s324
      %s328 = smul.addr %s327, 4
      %s329 = scalar_lea.vmem %s2, %s328
      %p330 = scmp.lt.s32.totalorder %s20, 1
      %s331 = scalar_select %p330, %s20, 1
      %s332 = smul.addr %s331, 8
      %s333 = scalar_lea.vmem %s3, %s332
      %p334 = scmp.lt.s32.totalorder %s20, 1
      %s335 = scalar_select %p334, %s20, 1
      %s336 = smul.addr %s335, 8
      %s337 = scalar_lea.vmem %s4, %s336
      // Predicated region
      $region33: #{_lambda_.4} parent=27 // pred_check
        %p338 = pneg %p97
      $region34: #{_lambda_.4} parent=27 // pred_check_branch
        %340 = sbr.rel (%p338) target = $region36
      $region35: #{_lambda_.4} parent=27 // pred_region
        _
      $region36: #{_lambda_.4} parent=27 // pred_fallthru
        _
      // Predicated region
      $region37: #{_lambda_.4} parent=27 // pred_check
        %p341 = pneg %p123
      $region38: #{_lambda_.4} parent=27 // pred_check_branch
        %343 = sbr.rel (%p341) target = $region40
      $region39: #{_lambda_.4} parent=27 // pred_region
        _
      $region40: #{_lambda_.4} parent=27 // pred_fallthru
        _
      // Predicated region
      $region41: #{_lambda_.4} parent=27 // pred_check
        %p344 = pneg %p149
      $region42: #{_lambda_.4} parent=27 // pred_check_branch
        %346 = sbr.rel (%p344) target = $region44
      $region43: #{_lambda_.4} parent=27 // pred_region
        _
      $region44: #{_lambda_.4} parent=27 // pred_fallthru
        _
    $region28: #{_lambda_.4} parent=5 // pred_fallthru
      _
    %p347 = scmp.le.s32.totalorder 2, %s11
    // Predicated region
    $region45: #{_lambda_.4} parent=5 // pred_check
      %p348 = pneg %p347
    $region46: #{_lambda_.4} parent=5 // pred_check_branch
      %350 = sbr.rel (%p348) target = $region48
    $region47: #{_lambda_.4} parent=5 // pred_region
      %s351 = ssub.s32 %s11, 2
      // Predicated region
      $region49: #{_lambda_.4} parent=47 // pred_check
        %p352 = pneg %p103
      $region50: #{_lambda_.4} parent=47 // pred_check_branch
        %354 = sbr.rel (%p352) target = $region52
      $region51: #{_lambda_.4} parent=47 // pred_region
        %p355 = scmp.lt.s32.totalorder %s22, 1
        %s356 = scalar_select %p355, %s22, 1
        %p357 = scmp.lt.s32.totalorder %s23, 0
        %s358 = scalar_select %p357, %s23, 0
        %s359 = sadd.s32 %s358, %s356
        %s360 = smul.addr %s359, 4
        %s361 = scalar_lea.vmem %s2, %s360
      $region52: #{_lambda_.4} parent=47 // pred_fallthru
        _
      // Predicated region
      $region53: #{_lambda_.4} parent=47 // pred_check
        %p362 = pneg %p129
      $region54: #{_lambda_.4} parent=47 // pred_check_branch
        %364 = sbr.rel (%p362) target = $region56
      $region55: #{_lambda_.4} parent=47 // pred_region
        %p365 = scmp.lt.s32.totalorder %s22, 1
        %s366 = scalar_select %p365, %s22, 1
        %s367 = smul.addr %s366, 8
        %s368 = scalar_lea.vmem %s3, %s367
      $region56: #{_lambda_.4} parent=47 // pred_fallthru
        _
      // Predicated region
      $region57: #{_lambda_.4} parent=47 // pred_check
        %p369 = pneg %p155
      $region58: #{_lambda_.4} parent=47 // pred_check_branch
        %371 = sbr.rel (%p369) target = $region60
      $region59: #{_lambda_.4} parent=47 // pred_region
        %p372 = scmp.lt.s32.totalorder %s22, 1
        %s373 = scalar_select %p372, %s22, 1
        %s374 = smul.addr %s373, 8
        %s375 = scalar_lea.vmem %s4, %s374
      $region60: #{_lambda_.4} parent=47 // pred_fallthru
        _
    $region48: #{_lambda_.4} parent=5 // pred_fallthru
      _
  $region6: #{_lambda_.4} parent=0 // loop_footer
    %s15 = sadd.s32 1, %s11
  $region7: #{_lambda_.4} parent=0 // loop_footer_branch
    %10 = sbr.rel target = $region3
  $region8: #{_lambda_.4} parent=0 // loop_exit
    _

// kernel: _lambda_.5
$region0: #{_lambda_.5}
  #allocation0 [shape = 'u32[]', space=smem, size = 0x4, offset = 0x4, fixed_abs, tag = 'smem constant byte address 0x4 - core index']
  #allocation1 [shape = 'u32[144,128]{1,0:T(1,128)}', space=vmem, size = 0x12000, scoped, tag = 'internal scratch']
  %s0 = inlined_call_operand.vmem [shape: bf16[2,8,128], index: 0, kind: input, shape index: {}, may-alias: {0,3}]
  %s1 = inlined_call_operand.vmem [shape: f32[8,1], index: 1, kind: input, shape index: {}]
  %s2 = inlined_call_operand.vmem [shape: f32[8,1], index: 2, kind: input, shape index: {}]
  %s3 = inlined_call_operand.vmem [shape: bf16[2,8,128], index: 3, kind: output, shape index: {}, may-alias: {0,3}]
  %s4 = sld [smem:[#allocation0]]
  $region45: #{_lambda_.5} parent=0
    _
  %s6 = ssub.s32 1, %s4
  %s7 = scalar_select 0, %s6, %s4
  loop: start=0, step=1, limit=4
  $region2: #{_lambda_.5} parent=0 // loop_pre_header
    _
  $region3: #{_lambda_.5} parent=0 // loop_header
    %s9 = sphi 0, %s13
    %p10 = scmp.ge.s32.totalorder %s9, 4
    %s16 = sphi 0, %s28
    %s17 = sphi 0, %s24
    %s18 = sphi 0, %s16
    %s19 = sphi 0, %s17
    %s20 = sphi 0, %s18
    %s21 = sphi 0, %s19
    %s33 = sphi 0, %s35
    %s36 = sphi 0, %s33
    %s37 = sphi 0, %s36
    %s53 = sphi 0, %s37
    %s57 = sphi 0, %s57
    %s59 = sphi 0, %s57
    %s60 = sphi 0, %s59
    %s74 = sphi 0, %s60
    %s78 = sphi 0, %s78
    %s80 = sphi 0, %s78
    %s81 = sphi 0, %s80
    %s95 = sphi 0, %s81
    %s103 = sphi 0, %s105
    %s106 = sphi 0, %s103
    %s107 = sphi 0, %s106
    %s123 = sphi 0, %s107
  $region4: #{_lambda_.5} parent=0 // loop_header_branch
    %12 = sbr.rel (%p10) target = $region8
  $region5: #{_lambda_.5} parent=0 // loop_body
    %s14 = ssub.s32 %s9, 1
    %s15 = ssub.s32 %s9, 2
    %s22 = sadd.s32 1, %s17
    %p23 = scmp.ge.s32.totalorder %s22, 1
    %s24 = scalar_select %p23, 0, %s22
    %s25 = sadd.s32 1, %s16
    %s26 = scalar_select %p23, %s25, %s16
    %p27 = scmp.ge.s32.totalorder %s26, 2
    %s28 = scalar_select %p27, 0, %s26
    %s29 = ssub.s32 %s16, %s28
    %s30 = ssub.s32 %s17, %s24
    %s31 = sor.u32 %s29, %s30
    %p32 = scmp.eq.s32.totalorder %s31, 0
    %s34 = sadd.s32 %s33, 1
    %s35 = scalar_select %p32, %s33, %s34
    %p38 = pneg %p32
    %p39 = scmp.eq.s32.totalorder %s9, 1
    %p40 = por %p38, %p39
    %p41 = scmp.ne.s32.totalorder %s33, %s36
    %p42 = scmp.eq.s32.totalorder %s9, 0
    %p43 = por %p41, %p42
    %p44 = scmp.ne.s32.totalorder %s33, %s36
    %p45 = scmp.eq.s32.totalorder %s14, 1
    %p46 = por %p44, %p45
    %p47 = scmp.ne.s32.totalorder %s36, %s37
    %p48 = scmp.eq.s32.totalorder %s14, 0
    %p49 = por %p47, %p48
    %p50 = scmp.ne.s32.totalorder %s36, %s37
    %p51 = scmp.eq.s32.totalorder %s15, 1
    %p52 = por %p50, %p51
    %p54 = scmp.ne.s32.totalorder %s37, %s53
    %p55 = scmp.eq.s32.totalorder %s15, 0
    %p56 = por %p54, %p55
    %s58 = sadd.s32 %s57, 1
    %p61 = scmp.eq.s32.totalorder %s9, 1
    %p62 = scmp.ne.s32.totalorder %s57, %s59
    %p63 = scmp.eq.s32.totalorder %s9, 0
    %p64 = por %p62, %p63
    %p65 = scmp.ne.s32.totalorder %s57, %s59
    %p66 = scmp.eq.s32.totalorder %s14, 1
    %p67 = por %p65, %p66
    %p68 = scmp.ne.s32.totalorder %s59, %s60
    %p69 = scmp.eq.s32.totalorder %s14, 0
    %p70 = por %p68, %p69
    %p71 = scmp.ne.s32.totalorder %s59, %s60
    %p72 = scmp.eq.s32.totalorder %s15, 1
    %p73 = por %p71, %p72
    %p75 = scmp.ne.s32.totalorder %s60, %s74
    %p76 = scmp.eq.s32.totalorder %s15, 0
    %p77 = por %p75, %p76
    %s79 = sadd.s32 %s78, 1
    %p82 = scmp.eq.s32.totalorder %s9, 1
    %p83 = scmp.ne.s32.totalorder %s78, %s80
    %p84 = scmp.eq.s32.totalorder %s9, 0
    %p85 = por %p83, %p84
    %p86 = scmp.ne.s32.totalorder %s78, %s80
    %p87 = scmp.eq.s32.totalorder %s14, 1
    %p88 = por %p86, %p87
    %p89 = scmp.ne.s32.totalorder %s80, %s81
    %p90 = scmp.eq.s32.totalorder %s14, 0
    %p91 = por %p89, %p90
    %p92 = scmp.ne.s32.totalorder %s80, %s81
    %p93 = scmp.eq.s32.totalorder %s15, 1
    %p94 = por %p92, %p93
    %p96 = scmp.ne.s32.totalorder %s81, %s95
    %p97 = scmp.eq.s32.totalorder %s15, 0
    %p98 = por %p96, %p97
    %s99 = ssub.s32 %s16, %s28
    %s100 = ssub.s32 %s17, %s24
    %s101 = sor.u32 %s99, %s100
    %p102 = scmp.eq.s32.totalorder %s101, 0
    %s104 = sadd.s32 %s103, 1
    %s105 = scalar_select %p102, %s103, %s104
    %p108 = pneg %p102
    %p109 = scmp.eq.s32.totalorder %s9, 1
    %p110 = por %p108, %p109
    %p111 = scmp.ne.s32.totalorder %s103, %s106
    %p112 = scmp.eq.s32.totalorder %s9, 0
    %p113 = por %p111, %p112
    %p114 = scmp.ne.s32.totalorder %s103, %s106
    %p115 = scmp.eq.s32.totalorder %s14, 1
    %p116 = por %p114, %p115
    %p117 = scmp.ne.s32.totalorder %s106, %s107
    %p118 = scmp.eq.s32.totalorder %s14, 0
    %p119 = por %p117, %p118
    %p120 = scmp.ne.s32.totalorder %s106, %s107
    %p121 = scmp.eq.s32.totalorder %s15, 1
    %p122 = por %p120, %p121
    %p124 = scmp.ne.s32.totalorder %s107, %s123
    %p125 = scmp.eq.s32.totalorder %s15, 0
    %p126 = por %p124, %p125
    %p127 = scmp.le.s32.totalorder 1, %s9
    %p128 = scmp.lt.s32.totalorder %s9, 3
    %p129 = pnand %p127, %p128
    %p130 = pneg %p129
    // Predicated region
    $region9: #{_lambda_.5} parent=5 // pred_check
      _
    $region10: #{_lambda_.5} parent=5 // pred_check_branch
      %132 = sbr.rel (%p129) target = $region12
    $region11: #{_lambda_.5} parent=5 // pred_region
      %s133 = ssub.s32 %s9, 1
      // Predicated region
      $region13: #{_lambda_.5} parent=11 // pred_check
        %p134 = pneg %p70
      $region14: #{_lambda_.5} parent=11 // pred_check_branch
        %136 = sbr.rel (%p134) target = $region16
      $region15: #{_lambda_.5} parent=11 // pred_region
        _
      $region16: #{_lambda_.5} parent=11 // pred_fallthru
        _
      // Predicated region
      $region17: #{_lambda_.5} parent=11 // pred_check
        %p137 = pneg %p91
      $region18: #{_lambda_.5} parent=11 // pred_check_branch
        %139 = sbr.rel (%p137) target = $region20
      $region19: #{_lambda_.5} parent=11 // pred_region
        _
      $region20: #{_lambda_.5} parent=11 // pred_fallthru
        _
    $region12: #{_lambda_.5} parent=5 // pred_fallthru
      _
    %p140 = scmp.lt.s32.totalorder %s9, 2
    // Predicated region
    $region21: #{_lambda_.5} parent=5 // pred_check
      %p141 = pneg %p140
    $region22: #{_lambda_.5} parent=5 // pred_check_branch
      %143 = sbr.rel (%p141) target = $region24
    $region23: #{_lambda_.5} parent=5 // pred_region
      // Predicated region
      $region25: #{_lambda_.5} parent=23 // pred_check
        %p144 = pneg %p43
      $region26: #{_lambda_.5} parent=23 // pred_check_branch
        %146 = sbr.rel (%p144) target = $region28
      $region27: #{_lambda_.5} parent=23 // pred_region
        %p147 = scmp.lt.s32.totalorder %s16, 1
        %s148 = scalar_select %p147, %s16, 1
        %p149 = scmp.lt.s32.totalorder %s17, 0
        %s150 = scalar_select %p149, %s17, 0
        %s151 = sadd.s32 %s150, %s148
        %s152 = smul.addr %s151, 4
        %s153 = scalar_lea.vmem %s0, %s152
      $region28: #{_lambda_.5} parent=23 // pred_fallthru
        _
    $region24: #{_lambda_.5} parent=5 // pred_fallthru
      _
    %p154 = scmp.le.s32.totalorder 1, %s9
    %p155 = scmp.lt.s32.totalorder %s9, 3
    %p156 = pnand %p154, %p155
    %p157 = pneg %p156
    // Predicated region
    $region29: #{_lambda_.5} parent=5 // pred_check
      _
    $region30: #{_lambda_.5} parent=5 // pred_check_branch
      %159 = sbr.rel (%p156) target = $region32
    $region31: #{_lambda_.5} parent=5 // pred_region
      %s160 = ssub.s32 %s9, 1
      %p161 = scmp.lt.s32.totalorder %s18, 1
      %s162 = scalar_select %p161, %s18, 1
      %p163 = scmp.lt.s32.totalorder %s19, 0
      %s164 = scalar_select %p163, %s19, 0
      %s165 = sadd.s32 %s164, %s162
      %s166 = smul.addr %s165, 4
      %s167 = scalar_lea.vmem %s0, %s166
      %p168 = pneg %p49
      %p169 = pneg %p46
      %p170 = pneg %p70
      %p171 = pneg %p67
      %p172 = pneg %p91
      %p173 = pneg %p88
      %p174 = pneg %p119
      %p175 = pneg %p116
      %p176 = scmp.lt.s32.totalorder %s18, 1
      %s177 = scalar_select %p176, %s18, 1
      %p178 = scmp.lt.s32.totalorder %s19, 0
      %s179 = scalar_select %p178, %s19, 0
      %s180 = sadd.s32 %s179, %s177
      %s181 = smul.addr %s180, 4
      %s182 = scalar_lea.vmem %s3, %s181
      %p183 = scmp.lt.s32.totalorder %s18, 1
      %s184 = scalar_select %p183, %s18, 1
      %p185 = scmp.lt.s32.totalorder %s19, 0
      %s186 = scalar_select %p185, %s19, 0
      %s187 = sadd.s32 %s186, %s184
      %s188 = smul.addr %s187, 4
      %s189 = scalar_lea.vmem %s0, %s188
      %p190 = scmp.lt.s32.totalorder %s18, 1
      %s191 = scalar_select %p190, %s18, 1
      %p192 = scmp.lt.s32.totalorder %s19, 0
      %s193 = scalar_select %p192, %s19, 0
      %s194 = sadd.s32 %s193, %s191
      %s195 = smul.addr %s194, 4
      %s196 = scalar_lea.vmem %s3, %s195
      %v197 = vld [vmem:[%s189] sm:$0xf]
      %v198 = vunpack.c.l.bf16 %v197
      %v199 = vld [vmem:[%s1] sm:$0xff]
      %201 = vset.pattern.permute.xlu0 0
      %202 = vperm.xlu0 %201, %v199
      %v203 = vpop.permute.xlu0 %202
      %v205 = vmul.f32 %v198, %v203
      %v206 = vld [vmem:[%s2] sm:$0xff]
      %208 = vset.pattern.permute.xlu0 0
      %209 = vperm.xlu0 %208, %v206
      %v210 = vpop.permute.xlu0 %209
      %v212 = vadd.f32 %v205, %v210
      %v213 = vmax.f32 %v212, 0.0
      %v214 = vpack.c.bf16 %v213, %v213
      %215 = vst [vmem:[%s196] sm:$0xf] %v214
      %p216 = scmp.lt.s32.totalorder %s18, 1
      %s217 = scalar_select %p216, %s18, 1
      %p218 = scmp.lt.s32.totalorder %s19, 0
      %s219 = scalar_select %p218, %s19, 0
      %s220 = sadd.s32 %s219, %s217
      %s221 = smul.addr %s220, 4
      %s222 = scalar_lea.vmem %s3, %s221
      // Predicated region
      $region33: #{_lambda_.5} parent=31 // pred_check
        %p223 = pneg %p116
      $region34: #{_lambda_.5} parent=31 // pred_check_branch
        %225 = sbr.rel (%p223) target = $region36
      $region35: #{_lambda_.5} parent=31 // pred_region
        _
      $region36: #{_lambda_.5} parent=31 // pred_fallthru
        _
    $region32: #{_lambda_.5} parent=5 // pred_fallthru
      _
    %p226 = scmp.le.s32.totalorder 2, %s9
    // Predicated region
    $region37: #{_lambda_.5} parent=5 // pred_check
      %p227 = pneg %p226
    $region38: #{_lambda_.5} parent=5 // pred_check_branch
      %229 = sbr.rel (%p227) target = $region40
    $region39: #{_lambda_.5} parent=5 // pred_region
      %s230 = ssub.s32 %s9, 2
      // Predicated region
      $region41: #{_lambda_.5} parent=39 // pred_check
        %p231 = pneg %p122
      $region42: #{_lambda_.5} parent=39 // pred_check_branch
        %233 = sbr.rel (%p231) target = $region44
      $region43: #{_lambda_.5} parent=39 // pred_region
        %p234 = scmp.lt.s32.totalorder %s20, 1
        %s235 = scalar_select %p234, %s20, 1
        %p236 = scmp.lt.s32.totalorder %s21, 0
        %s237 = scalar_select %p236, %s21, 0
        %s238 = sadd.s32 %s237, %s235
        %s239 = smul.addr %s238, 4
        %s240 = scalar_lea.vmem %s3, %s239
      $region44: #{_lambda_.5} parent=39 // pred_fallthru
        _
    $region40: #{_lambda_.5} parent=5 // pred_fallthru
      _
  $region6: #{_lambda_.5} parent=0 // loop_footer
    %s13 = sadd.s32 1, %s9
  $region7: #{_lambda_.5} parent=0 // loop_footer_branch
    %8 = sbr.rel target = $region3
  $region8: #{_lambda_.5} parent=0 // loop_exit
    _

// kernel: _lambda_.6
$region0: #{_lambda_.6}
  #allocation0 [shape = 'u32[]', space=smem, size = 0x4, offset = 0x4, fixed_abs, tag = 'smem constant byte address 0x4 - core index']
  #allocation1 [shape = 'u32[144,128]{1,0:T(1,128)}', space=vmem, size = 0x12000, scoped, tag = 'internal scratch']
  %s0 = inlined_call_operand.vmem [shape: bf16[2,32,128], index: 0, kind: input, shape index: {}]
  %s1 = inlined_call_operand.vmem [shape: bf16[16,32], index: 1, kind: input, shape index: {}]
  %s2 = inlined_call_operand.vmem [shape: bf16[2,16,128], index: 2, kind: output, shape index: {0}]
  %s3 = inlined_call_operand.vmem [shape: f32[2,16,1], index: 3, kind: output, shape index: {1}]
  %s4 = inlined_call_operand.vmem [shape: f32[2,16,1], index: 4, kind: output, shape index: {2}]
  %5 = xla_tuple %s2, %s3, %s4
  %s6 = sld [smem:[#allocation0]]
  $region61: #{_lambda_.6} parent=0
    _
  %s8 = ssub.s32 1, %s6
  %s9 = scalar_select 0, %s8, %s6
  loop: start=0, step=1, limit=4
  $region2: #{_lambda_.6} parent=0 // loop_pre_header
    _
  $region3: #{_lambda_.6} parent=0 // loop_header
    %s11 = sphi 0, %s15
    %p12 = scmp.ge.s32.totalorder %s11, 4
    %s18 = sphi 0, %s30
    %s19 = sphi 0, %s26
    %s20 = sphi 0, %s18
    %s21 = sphi 0, %s19
    %s22 = sphi 0, %s20
    %s23 = sphi 0, %s21
    %s35 = sphi 0, %s37
    %s38 = sphi 0, %s35
    %s39 = sphi 0, %s38
    %s55 = sphi 0, %s39
    %s59 = sphi 0, %s59
    %s61 = sphi 0, %s59
    %s62 = sphi 0, %s61
    %s76 = sphi 0, %s62
    %s84 = sphi 0, %s86
    %s87 = sphi 0, %s84
    %s88 = sphi 0, %s87
    %s104 = sphi 0, %s88
    %s110 = sphi 0, %s112
    %s113 = sphi 0, %s110
    %s114 = sphi 0, %s113
    %s130 = sphi 0, %s114
    %s136 = sphi 0, %s138
    %s139 = sphi 0, %s136
    %s140 = sphi 0, %s139
    %s156 = sphi 0, %s140
  $region4: #{_lambda_.6} parent=0 // loop_header_branch
    %14 = sbr.rel (%p12) target = $region8
  $region5: #{_lambda_.6} parent=0 // loop_body
    %s16 = ssub.s32 %s11, 1
    %s17 = ssub.s32 %s11, 2
    %s24 = sadd.s32 1, %s19
    %p25 = scmp.ge.s32.totalorder %s24, 1
    %s26 = scalar_select %p25, 0, %s24
    %s27 = sadd.s32 1, %s18
    %s28 = scalar_select %p25, %s27, %s18
    %p29 = scmp.ge.s32.totalorder %s28, 2
    %s30 = scalar_select %p29, 0, %s28
    %s31 = ssub.s32 %s18, %s30
    %s32 = ssub.s32 %s19, %s26
    %s33 = sor.u32 %s31, %s32
    %p34 = scmp.eq.s32.totalorder %s33, 0
    %s36 = sadd.s32 %s35, 1
    %s37 = scalar_select %p34, %s35, %s36
    %p40 = pneg %p34
    %p41 = scmp.eq.s32.totalorder %s11, 1
    %p42 = por %p40, %p41
    %p43 = scmp.ne.s32.totalorder %s35, %s38
    %p44 = scmp.eq.s32.totalorder %s11, 0
    %p45 = por %p43, %p44
    %p46 = scmp.ne.s32.totalorder %s35, %s38
    %p47 = scmp.eq.s32.totalorder %s16, 1
    %p48 = por %p46, %p47
    %p49 = scmp.ne.s32.totalorder %s38, %s39
    %p50 = scmp.eq.s32.totalorder %s16, 0
    %p51 = por %p49, %p50
    %p52 = scmp.ne.s32.totalorder %s38, %s39
    %p53 = scmp.eq.s32.totalorder %s17, 1
    %p54 = por %p52, %p53
    %p56 = scmp.ne.s32.totalorder %s39, %s55
    %p57 = scmp.eq.s32.totalorder %s17, 0
    %p58 = por %p56, %p57
    %s60 = sadd.s32 %s59, 1
    %p63 = scmp.eq.s32.totalorder %s11, 1
    %p64 = scmp.ne.s32.totalorder %s59, %s61
    %p65 = scmp.eq.s32.totalorder %s11, 0
    %p66 = por %p64, %p65
    %p67 = scmp.ne.s32.totalorder %s59, %s61
    %p68 = scmp.eq.s32.totalorder %s16, 1
    %p69 = por %p67, %p68
    %p70 = scmp.ne.s32.totalorder %s61, %s62
    %p71 = scmp.eq.s32.totalorder %s16, 0
    %p72 = por %p70, %p71
    %p73 = scmp.ne.s32.totalorder %s61, %s62
    %p74 = scmp.eq.s32.totalorder %s17, 1
    %p75 = por %p73, %p74
    %p77 = scmp.ne.s32.totalorder %s62, %s76
    %p78 = scmp.eq.s32.totalorder %s17, 0
    %p79 = por %p77, %p78
    %s80 = ssub.s32 %s18, %s30
    %s81 = ssub.s32 %s19, %s26
    %s82 = sor.u32 %s80, %s81
    %p83 = scmp.eq.s32.totalorder %s82, 0
    %s85 = sadd.s32 %s84, 1
    %s86 = scalar_select %p83, %s84, %s85
    %p89 = pneg %p83
    %p90 = scmp.eq.s32.totalorder %s11, 1
    %p91 = por %p89, %p90
    %p92 = scmp.ne.s32.totalorder %s84, %s87
    %p93 = scmp.eq.s32.totalorder %s11, 0
    %p94 = por %p92, %p93
    %p95 = scmp.ne.s32.totalorder %s84, %s87
    %p96 = scmp.eq.s32.totalorder %s16, 1
    %p97 = por %p95, %p96
    %p98 = scmp.ne.s32.totalorder %s87, %s88
    %p99 = scmp.eq.s32.totalorder %s16, 0
    %p100 = por %p98, %p99
    %p101 = scmp.ne.s32.totalorder %s87, %s88
    %p102 = scmp.eq.s32.totalorder %s17, 1
    %p103 = por %p101, %p102
    %p105 = scmp.ne.s32.totalorder %s88, %s104
    %p106 = scmp.eq.s32.totalorder %s17, 0
    %p107 = por %p105, %p106
    %s108 = ssub.s32 %s18, %s30
    %p109 = scmp.eq.s32.totalorder %s108, 0
    %s111 = sadd.s32 %s110, 1
    %s112 = scalar_select %p109, %s110, %s111
    %p115 = pneg %p109
    %p116 = scmp.eq.s32.totalorder %s11, 1
    %p117 = por %p115, %p116
    %p118 = scmp.ne.s32.totalorder %s110, %s113
    %p119 = scmp.eq.s32.totalorder %s11, 0
    %p120 = por %p118, %p119
    %p121 = scmp.ne.s32.totalorder %s110, %s113
    %p122 = scmp.eq.s32.totalorder %s16, 1
    %p123 = por %p121, %p122
    %p124 = scmp.ne.s32.totalorder %s113, %s114
    %p125 = scmp.eq.s32.totalorder %s16, 0
    %p126 = por %p124, %p125
    %p127 = scmp.ne.s32.totalorder %s113, %s114
    %p128 = scmp.eq.s32.totalorder %s17, 1
    %p129 = por %p127, %p128
    %p131 = scmp.ne.s32.totalorder %s114, %s130
    %p132 = scmp.eq.s32.totalorder %s17, 0
    %p133 = por %p131, %p132
    %s134 = ssub.s32 %s18, %s30
    %p135 = scmp.eq.s32.totalorder %s134, 0
    %s137 = sadd.s32 %s136, 1
    %s138 = scalar_select %p135, %s136, %s137
    %p141 = pneg %p135
    %p142 = scmp.eq.s32.totalorder %s11, 1
    %p143 = por %p141, %p142
    %p144 = scmp.ne.s32.totalorder %s136, %s139
    %p145 = scmp.eq.s32.totalorder %s11, 0
    %p146 = por %p144, %p145
    %p147 = scmp.ne.s32.totalorder %s136, %s139
    %p148 = scmp.eq.s32.totalorder %s16, 1
    %p149 = por %p147, %p148
    %p150 = scmp.ne.s32.totalorder %s139, %s140
    %p151 = scmp.eq.s32.totalorder %s16, 0
    %p152 = por %p150, %p151
    %p153 = scmp.ne.s32.totalorder %s139, %s140
    %p154 = scmp.eq.s32.totalorder %s17, 1
    %p155 = por %p153, %p154
    %p157 = scmp.ne.s32.totalorder %s140, %s156
    %p158 = scmp.eq.s32.totalorder %s17, 0
    %p159 = por %p157, %p158
    %p160 = scmp.le.s32.totalorder 1, %s11
    %p161 = scmp.lt.s32.totalorder %s11, 3
    %p162 = pnand %p160, %p161
    %p163 = pneg %p162
    // Predicated region
    $region9: #{_lambda_.6} parent=5 // pred_check
      _
    $region10: #{_lambda_.6} parent=5 // pred_check_branch
      %165 = sbr.rel (%p162) target = $region12
    $region11: #{_lambda_.6} parent=5 // pred_region
      %s166 = ssub.s32 %s11, 1
      // Predicated region
      $region13: #{_lambda_.6} parent=11 // pred_check
        %p167 = pneg %p72
      $region14: #{_lambda_.6} parent=11 // pred_check_branch
        %169 = sbr.rel (%p167) target = $region16
      $region15: #{_lambda_.6} parent=11 // pred_region
        _
      $region16: #{_lambda_.6} parent=11 // pred_fallthru
        _
    $region12: #{_lambda_.6} parent=5 // pred_fallthru
      _
    %p170 = scmp.lt.s32.totalorder %s11, 2
    // Predicated region
    $region17: #{_lambda_.6} parent=5 // pred_check
      %p171 = pneg %p170
    $region18: #{_lambda_.6} parent=5 // pred_check_branch
      %173 = sbr.rel (%p171) target = $region20
    $region19: #{_lambda_.6} parent=5 // pred_region
      // Predicated region
      $region21: #{_lambda_.6} parent=19 // pred_check
        %p174 = pneg %p45
      $region22: #{_lambda_.6} parent=19 // pred_check_branch
        %176 = sbr.rel (%p174) target = $region24
      $region23: #{_lambda_.6} parent=19 // pred_region
        %p177 = scmp.lt.s32.totalorder %s18, 1
        %s178 = scalar_select %p177, %s18, 1
        %p179 = scmp.lt.s32.totalorder %s19, 0
        %s180 = scalar_select %p179, %s19, 0
        %s181 = smul.addr %s178, 4
        %s182 = sadd.s32 %s180, %s181
        %s183 = smul.addr %s182, 4
        %s184 = scalar_lea.vmem %s0, %s183
      $region24: #{_lambda_.6} parent=19 // pred_fallthru
        _
    $region20: #{_lambda_.6} parent=5 // pred_fallthru
      _
    %p185 = scmp.le.s32.totalorder 1, %s11
    %p186 = scmp.lt.s32.totalorder %s11, 3
    %p187 = pnand %p185, %p186
    %p188 = pneg %p187
    // Predicated region
    $region25: #{_lambda_.6} parent=5 // pred_check
      _
    $region26: #{_lambda_.6} parent=5 // pred_check_branch
      %190 = sbr.rel (%p187) target = $region28
    $region27: #{_lambda_.6} parent=5 // pred_region
      %s191 = ssub.s32 %s11, 1
      %p192 = scmp.lt.s32.totalorder %s20, 1
      %s193 = scalar_select %p192, %s20, 1
      %p194 = scmp.lt.s32.totalorder %s21, 0
      %s195 = scalar_select %p194, %s21, 0
      %s196 = smul.addr %s193, 4
      %s197 = sadd.s32 %s195, %s196
      %s198 = smul.addr %s197, 4
      %s199 = scalar_lea.vmem %s0, %s198
      %p200 = pneg %p51
      %p201 = pneg %p48
      %p202 = pneg %p72
      %p203 = pneg %p69
      %p204 = pneg %p100
      %p205 = pneg %p97
      %p206 = scmp.lt.s32.totalorder %s20, 1
      %s207 = scalar_select %p206, %s20, 1
      %p208 = scmp.lt.s32.totalorder %s21, 0
      %s209 = scalar_select %p208, %s21, 0
      %s210 = smul.addr %s207, 2
      %s211 = sadd.s32 %s209, %s210
      %s212 = smul.addr %s211, 4
      %s213 = scalar_lea.vmem %s2, %s212
      %p214 = pneg %p126
      %p215 = pneg %p123
      %p216 = scmp.lt.s32.totalorder %s20, 1
      %s217 = scalar_select %p216, %s20, 1
      %s218 = smul.addr %s217, 2
      %s219 = smul.addr %s218, 8
      %s220 = scalar_lea.vmem %s3, %s219
      %p221 = pneg %p152
      %p222 = pneg %p149
      %p223 = scmp.lt.s32.totalorder %s20, 1
      %s224 = scalar_select %p223, %s20, 1
      %s225 = smul.addr %s224, 2
      %s226 = smul.addr %s225, 8
      %s227 = scalar_lea.vmem %s4, %s226
      %p228 = scmp.lt.s32.totalorder %s20, 1
      %s229 = scalar_select %p228, %s20, 1
      %p230 = scmp.lt.s32.totalorder %s21, 0
      %s231 = scalar_select %p230, %s21, 0
      %s232 = smul.addr %s229, 4
      %s233 = sadd.s32 %s231, %s232
      %s234 = smul.addr %s233, 4
      %s235 = scalar_lea.vmem %s0, %s234
      %p236 = scmp.lt.s32.totalorder %s20, 1
      %s237 = scalar_select %p236, %s20, 1
      %p238 = scmp.lt.s32.totalorder %s21, 0
      %s239 = scalar_select %p238, %s21, 0
      %s240 = smul.addr %s237, 2
      %s241 = sadd.s32 %s239, %s240
      %s242 = smul.addr %s241, 4
      %s243 = scalar_lea.vmem %s2, %s242
      %p244 = scmp.lt.s32.totalorder %s20, 1
      %s245 = scalar_select %p244, %s20, 1
      %s246 = smul.addr %s245, 2
      %s247 = smul.addr %s246, 8
      %s248 = scalar_lea.vmem %s3, %s247
      %p249 = scmp.lt.s32.totalorder %s20, 1
      %s250 = scalar_select %p249, %s20, 1
      %s251 = smul.addr %s250, 2
      %s252 = smul.addr %s251, 8
      %s253 = scalar_lea.vmem %s4, %s252
      %p255 = scmp.eq.s32.totalorder %s21, 0
      // Predicated region
      $region29: #{_lambda_.6} parent=27 // pred_check
        %p256 = pneg %p255
      $region30: #{_lambda_.6} parent=27 // pred_check_branch
        %258 = sbr.rel (%p256) target = $region32
      $region31: #{_lambda_.6} parent=27 // pred_region
        %vm259 = vcmask 7168
        %260 = vst.msk [vmem:[%s248] sm:$0xff] %vm259, 0.0
        %261 = vst.msk [vmem:[%s248 + $0x8] sm:$0xff] %vm259, 0.0
        %262 = vst.msk [vmem:[%s253] sm:$0xff] %vm259, 0.0
        %263 = vst.msk [vmem:[%s253 + $0x8] sm:$0xff] %vm259, 0.0
      $region32: #{_lambda_.6} parent=27 // pred_fallthru
        _
      %v264 = vld [vmem:[%s1] sm:$0xf]
      %v265 = vld [vmem:[%s1 + $0x4] sm:$0xf]
      %v266 = vld [vmem:[%s235] sm:$0xf]
      %v267 = vld [vmem:[%s235 + $0x4] sm:$0xf]
      %v268 = vld [vmem:[%s235 + $0x8] sm:$0xf]
      %v269 = vld [vmem:[%s235 + $0xc] sm:$0xf]
      %v272 = vunpack.c.l.b16 %v264
      %v273 = vunpack.c.l.b16 %v265
      %v274 = vpack.c.b16 %v273, %v272
      %v279 = vunpack.c.l.b16 %v266
      %v280 = vunpack.c.l.b16 %v267
      %v281 = vunpack.c.l.b16 %v268
      %v282 = vunpack.c.l.b16 %v269
      %v283 = vpack.c.b16 %v280, %v279
      %v284 = vpack.c.b16 %v282, %v281
      %vm287 = vcmask 261120
      %v289 = vsel %vm287, %v274, 0
      %291 = vmatprep.subr.bf16.mxu0 0
      %292 = vmatpush1.bf16.msra.mxu0 %v283
      %293 = vmatprep.subr.bf16.mxu0 0
      %294 = vmatpush1.bf16.msra.mxu0 %v284
      %295 = vmatprep.subr.bf16.mxu0 0
      %296 = vmatpush1.bf16.msra.mxu0 0
      %297 = vmatprep.subr.bf16.mxu0 0
      %298 = vmatpush1.bf16.msra.mxu0 0
      %299 = vmatprep.subr.bf16.mxu0 0
      %300 = vmatpush1.bf16.msra.mxu0 0
      %301 = vmatprep.subr.bf16.mxu0 0
      %302 = vmatpush1.bf16.msra.mxu0 0
      %303 = vmatprep.subr.bf16.mxu0 0
      %304 = vmatpush1.bf16.msra.mxu0 0
      %305 = vmatprep.subr.bf16.mxu0 0
      %306 = vmatpush1.bf16.msra.mxu0 0
      %307 = vmatprep.subr.bf16.mxu0 0
      %308 = vmatpush1.bf16.msra.mxu0 0
      %309 = vmatprep.subr.bf16.mxu0 0
      %310 = vmatpush1.bf16.msra.mxu0 0
      %311 = vmatprep.subr.bf16.mxu0 0
      %312 = vmatpush1.bf16.msra.mxu0 0
      %313 = vmatprep.subr.bf16.mxu0 0
      %314 = vmatpush1.bf16.msra.mxu0 0
      %315 = vmatprep.subr.bf16.mxu0 0
      %316 = vmatpush1.bf16.msra.mxu0 0
      %317 = vmatprep.subr.bf16.mxu0 0
      %318 = vmatpush1.bf16.msra.mxu0 0
      %319 = vmatprep.subr.bf16.mxu0 0
      %320 = vmatpush1.bf16.msra.mxu0 0
      %321 = vmatprep.subr.bf16.mxu0 0
      %322 = vmatpush1.bf16.msra.mxu0 0
      %323 = vmatprep.mubr.bf16.mxu0 0
      %324 = vmatmul.mubr.bf16.gmra.mrb[0].mxu0 %v289
      %v325 = vpop.f32.mrb[0].mxu0
      %v326 = vadd.f32 0.0, %v325
      %v327 = vpop.f32.mrb[0].mxu0
      %v328 = vpop.f32.mrb[0].mxu0
      %v329 = vadd.f32 0.0, %v328
      %v330 = vpop.f32.mrb[0].mxu0
      %331 = vdwg.mxu0
      %v332 = vpack.c.bf16 %v329, %v326
      %v334 = vunpack.c.l.b16 %v332
      %v335 = vunpack.c.h.b16 %v332
      %v336 = vpack.c.b16 %v334, %v334
      %v337 = vpack.c.b16 %v335, %v335
      %340 = vst [vmem:[%s243] sm:$0xf] %v336
      %341 = vst [vmem:[%s243 + $0x4] sm:$0xf] %v337
      %v342 = vld [vmem:[%s248] sm:$0xff]
      %v343 = vld [vmem:[%s248 + $0x8] sm:$0xff]
      %344 = vadd.xlane.f32.xlu0 %v326
      %v345 = vpop.xlane.xlu0 %344
      %346 = vadd.xlane.f32.xlu0 %v329
      %v347 = vpop.xlane.xlu0 %346
      %v348 = vadd.f32 %v342, %v345
      %v349 = vadd.f32 %v343, %v347
      %vm350 = vcmask 7168
      %351 = vst.msk [vmem:[%s248] sm:$0xff] %vm350, %v348
      %352 = vst.msk [vmem:[%s248 + $0x8] sm:$0xff] %vm350, %v349
      %v353 = vld [vmem:[%s253] sm:$0xff]
      %v354 = vld [vmem:[%s253 + $0x8] sm:$0xff]
      %v355 = vmul.f32 %v326, %v326
      %v356 = vmul.f32 %v329, %v329
      %357 = vadd.xlane.f32.xlu0 %v355
      %v358 = vpop.xlane.xlu0 %357
      %359 = vadd.xlane.f32.xlu0 %v356
      %v360 = vpop.xlane.xlu0 %359
      %v361 = vadd.f32 %v353, %v358
      %v362 = vadd.f32 %v354, %v360
      %363 = vst.msk [vmem:[%s253] sm:$0xff] %vm350, %v361
      %364 = vst.msk [vmem:[%s253 + $0x8] sm:$0xff] %vm350, %v362
      %p365 = scmp.lt.s32.totalorder %s20, 1
      %s366 = scalar_select %p365, %s20, 1
      %p367 = scmp.lt.s32.totalorder %s21, 0
      %s368 = scalar_select %p367, %s21, 0
      %s369 = smul.addr %s366, 2
      %s370 = sadd.s32 %s368, %s369
      %s371 = smul.addr %s370, 4
      %s372 = scalar_lea.vmem %s2, %s371
      %p373 = scmp.lt.s32.totalorder %s20, 1
      %s374 = scalar_select %p373, %s20, 1
      %s375 = smul.addr %s374, 2
      %s376 = smul.addr %s375, 8
      %s377 = scalar_lea.vmem %s3, %s376
      %p378 = scmp.lt.s32.totalorder %s20, 1
      %s379 = scalar_select %p378, %s20, 1
      %s380 = smul.addr %s379, 2
      %s381 = smul.addr %s380, 8
      %s382 = scalar_lea.vmem %s4, %s381
      // Predicated region
      $region33: #{_lambda_.6} parent=27 // pred_check
        %p383 = pneg %p97
      $region34: #{_lambda_.6} parent=27 // pred_check_branch
        %385 = sbr.rel (%p383) target = $region36
      $region35: #{_lambda_.6} parent=27 // pred_region
        _
      $region36: #{_lambda_.6} parent=27 // pred_fallthru
        _
      // Predicated region
      $region37: #{_lambda_.6} parent=27 // pred_check
        %p386 = pneg %p123
      $region38: #{_lambda_.6} parent=27 // pred_check_branch
        %388 = sbr.rel (%p386) target = $region40
      $region39: #{_lambda_.6} parent=27 // pred_region
        _
      $region40: #{_lambda_.6} parent=27 // pred_fallthru
        _
      // Predicated region
      $region41: #{_lambda_.6} parent=27 // pred_check
        %p389 = pneg %p149
      $region42: #{_lambda_.6} parent=27 // pred_check_branch
        %391 = sbr.rel (%p389) target = $region44
      $region43: #{_lambda_.6} parent=27 // pred_region
        _
      $region44: #{_lambda_.6} parent=27 // pred_fallthru
        _
    $region28: #{_lambda_.6} parent=5 // pred_fallthru
      _
    %p392 = scmp.le.s32.totalorder 2, %s11
    // Predicated region
    $region45: #{_lambda_.6} parent=5 // pred_check
      %p393 = pneg %p392
    $region46: #{_lambda_.6} parent=5 // pred_check_branch
      %395 = sbr.rel (%p393) target = $region48
    $region47: #{_lambda_.6} parent=5 // pred_region
      %s396 = ssub.s32 %s11, 2
      // Predicated region
      $region49: #{_lambda_.6} parent=47 // pred_check
        %p397 = pneg %p103
      $region50: #{_lambda_.6} parent=47 // pred_check_branch
        %399 = sbr.rel (%p397) target = $region52
      $region51: #{_lambda_.6} parent=47 // pred_region
        %p400 = scmp.lt.s32.totalorder %s22, 1
        %s401 = scalar_select %p400, %s22, 1
        %p402 = scmp.lt.s32.totalorder %s23, 0
        %s403 = scalar_select %p402, %s23, 0
        %s404 = smul.addr %s401, 2
        %s405 = sadd.s32 %s403, %s404
        %s406 = smul.addr %s405, 4
        %s407 = scalar_lea.vmem %s2, %s406
      $region52: #{_lambda_.6} parent=47 // pred_fallthru
        _
      // Predicated region
      $region53: #{_lambda_.6} parent=47 // pred_check
        %p408 = pneg %p129
      $region54: #{_lambda_.6} parent=47 // pred_check_branch
        %410 = sbr.rel (%p408) target = $region56
      $region55: #{_lambda_.6} parent=47 // pred_region
        %p411 = scmp.lt.s32.totalorder %s22, 1
        %s412 = scalar_select %p411, %s22, 1
        %s413 = smul.addr %s412, 2
        %s414 = smul.addr %s413, 8
        %s415 = scalar_lea.vmem %s3, %s414
      $region56: #{_lambda_.6} parent=47 // pred_fallthru
        _
      // Predicated region
      $region57: #{_lambda_.6} parent=47 // pred_check
        %p416 = pneg %p155
      $region58: #{_lambda_.6} parent=47 // pred_check_branch
        %418 = sbr.rel (%p416) target = $region60
      $region59: #{_lambda_.6} parent=47 // pred_region
        %p419 = scmp.lt.s32.totalorder %s22, 1
        %s420 = scalar_select %p419, %s22, 1
        %s421 = smul.addr %s420, 2
        %s422 = smul.addr %s421, 8
        %s423 = scalar_lea.vmem %s4, %s422
      $region60: #{_lambda_.6} parent=47 // pred_fallthru
        _
    $region48: #{_lambda_.6} parent=5 // pred_fallthru
      _
  $region6: #{_lambda_.6} parent=0 // loop_footer
    %s15 = sadd.s32 1, %s11
  $region7: #{_lambda_.6} parent=0 // loop_footer_branch
    %10 = sbr.rel target = $region3
  $region8: #{_lambda_.6} parent=0 // loop_exit
    _

// kernel: _lambda_.7
$region0: #{_lambda_.7}
  #allocation0 [shape = 'u32[]', space=smem, size = 0x4, offset = 0x4, fixed_abs, tag = 'smem constant byte address 0x4 - core index']
  #allocation1 [shape = 'u32[144,128]{1,0:T(1,128)}', space=vmem, size = 0x12000, scoped, tag = 'internal scratch']
  %s0 = inlined_call_operand.vmem [shape: bf16[2,16,128], index: 0, kind: input, shape index: {}]
  %s1 = inlined_call_operand.vmem [shape: f32[16,1], index: 1, kind: input, shape index: {}]
  %s2 = inlined_call_operand.vmem [shape: f32[16,1], index: 2, kind: input, shape index: {}]
  %s3 = inlined_call_operand.vmem [shape: f32[2,16,128], index: 3, kind: output, shape index: {}]
  %s4 = sld [smem:[#allocation0]]
  $region45: #{_lambda_.7} parent=0
    _
  %s6 = ssub.s32 1, %s4
  %s7 = scalar_select 0, %s6, %s4
  loop: start=0, step=1, limit=4
  $region2: #{_lambda_.7} parent=0 // loop_pre_header
    _
  $region3: #{_lambda_.7} parent=0 // loop_header
    %s9 = sphi 0, %s13
    %p10 = scmp.ge.s32.totalorder %s9, 4
    %s16 = sphi 0, %s28
    %s17 = sphi 0, %s24
    %s18 = sphi 0, %s16
    %s19 = sphi 0, %s17
    %s20 = sphi 0, %s18
    %s21 = sphi 0, %s19
    %s33 = sphi 0, %s35
    %s36 = sphi 0, %s33
    %s37 = sphi 0, %s36
    %s53 = sphi 0, %s37
    %s57 = sphi 0, %s57
    %s59 = sphi 0, %s57
    %s60 = sphi 0, %s59
    %s74 = sphi 0, %s60
    %s78 = sphi 0, %s78
    %s80 = sphi 0, %s78
    %s81 = sphi 0, %s80
    %s95 = sphi 0, %s81
    %s103 = sphi 0, %s105
    %s106 = sphi 0, %s103
    %s107 = sphi 0, %s106
    %s123 = sphi 0, %s107
  $region4: #{_lambda_.7} parent=0 // loop_header_branch
    %12 = sbr.rel (%p10) target = $region8
  $region5: #{_lambda_.7} parent=0 // loop_body
    %s14 = ssub.s32 %s9, 1
    %s15 = ssub.s32 %s9, 2
    %s22 = sadd.s32 1, %s17
    %p23 = scmp.ge.s32.totalorder %s22, 1
    %s24 = scalar_select %p23, 0, %s22
    %s25 = sadd.s32 1, %s16
    %s26 = scalar_select %p23, %s25, %s16
    %p27 = scmp.ge.s32.totalorder %s26, 2
    %s28 = scalar_select %p27, 0, %s26
    %s29 = ssub.s32 %s16, %s28
    %s30 = ssub.s32 %s17, %s24
    %s31 = sor.u32 %s29, %s30
    %p32 = scmp.eq.s32.totalorder %s31, 0
    %s34 = sadd.s32 %s33, 1
    %s35 = scalar_select %p32, %s33, %s34
    %p38 = pneg %p32
    %p39 = scmp.eq.s32.totalorder %s9, 1
    %p40 = por %p38, %p39
    %p41 = scmp.ne.s32.totalorder %s33, %s36
    %p42 = scmp.eq.s32.totalorder %s9, 0
    %p43 = por %p41, %p42
    %p44 = scmp.ne.s32.totalorder %s33, %s36
    %p45 = scmp.eq.s32.totalorder %s14, 1
    %p46 = por %p44, %p45
    %p47 = scmp.ne.s32.totalorder %s36, %s37
    %p48 = scmp.eq.s32.totalorder %s14, 0
    %p49 = por %p47, %p48
    %p50 = scmp.ne.s32.totalorder %s36, %s37
    %p51 = scmp.eq.s32.totalorder %s15, 1
    %p52 = por %p50, %p51
    %p54 = scmp.ne.s32.totalorder %s37, %s53
    %p55 = scmp.eq.s32.totalorder %s15, 0
    %p56 = por %p54, %p55
    %s58 = sadd.s32 %s57, 1
    %p61 = scmp.eq.s32.totalorder %s9, 1
    %p62 = scmp.ne.s32.totalorder %s57, %s59
    %p63 = scmp.eq.s32.totalorder %s9, 0
    %p64 = por %p62, %p63
    %p65 = scmp.ne.s32.totalorder %s57, %s59
    %p66 = scmp.eq.s32.totalorder %s14, 1
    %p67 = por %p65, %p66
    %p68 = scmp.ne.s32.totalorder %s59, %s60
    %p69 = scmp.eq.s32.totalorder %s14, 0
    %p70 = por %p68, %p69
    %p71 = scmp.ne.s32.totalorder %s59, %s60
    %p72 = scmp.eq.s32.totalorder %s15, 1
    %p73 = por %p71, %p72
    %p75 = scmp.ne.s32.totalorder %s60, %s74
    %p76 = scmp.eq.s32.totalorder %s15, 0
    %p77 = por %p75, %p76
    %s79 = sadd.s32 %s78, 1
    %p82 = scmp.eq.s32.totalorder %s9, 1
    %p83 = scmp.ne.s32.totalorder %s78, %s80
    %p84 = scmp.eq.s32.totalorder %s9, 0
    %p85 = por %p83, %p84
    %p86 = scmp.ne.s32.totalorder %s78, %s80
    %p87 = scmp.eq.s32.totalorder %s14, 1
    %p88 = por %p86, %p87
    %p89 = scmp.ne.s32.totalorder %s80, %s81
    %p90 = scmp.eq.s32.totalorder %s14, 0
    %p91 = por %p89, %p90
    %p92 = scmp.ne.s32.totalorder %s80, %s81
    %p93 = scmp.eq.s32.totalorder %s15, 1
    %p94 = por %p92, %p93
    %p96 = scmp.ne.s32.totalorder %s81, %s95
    %p97 = scmp.eq.s32.totalorder %s15, 0
    %p98 = por %p96, %p97
    %s99 = ssub.s32 %s16, %s28
    %s100 = ssub.s32 %s17, %s24
    %s101 = sor.u32 %s99, %s100
    %p102 = scmp.eq.s32.totalorder %s101, 0
    %s104 = sadd.s32 %s103, 1
    %s105 = scalar_select %p102, %s103, %s104
    %p108 = pneg %p102
    %p109 = scmp.eq.s32.totalorder %s9, 1
    %p110 = por %p108, %p109
    %p111 = scmp.ne.s32.totalorder %s103, %s106
    %p112 = scmp.eq.s32.totalorder %s9, 0
    %p113 = por %p111, %p112
    %p114 = scmp.ne.s32.totalorder %s103, %s106
    %p115 = scmp.eq.s32.totalorder %s14, 1
    %p116 = por %p114, %p115
    %p117 = scmp.ne.s32.totalorder %s106, %s107
    %p118 = scmp.eq.s32.totalorder %s14, 0
    %p119 = por %p117, %p118
    %p120 = scmp.ne.s32.totalorder %s106, %s107
    %p121 = scmp.eq.s32.totalorder %s15, 1
    %p122 = por %p120, %p121
    %p124 = scmp.ne.s32.totalorder %s107, %s123
    %p125 = scmp.eq.s32.totalorder %s15, 0
    %p126 = por %p124, %p125
    %p127 = scmp.le.s32.totalorder 1, %s9
    %p128 = scmp.lt.s32.totalorder %s9, 3
    %p129 = pnand %p127, %p128
    %p130 = pneg %p129
    // Predicated region
    $region9: #{_lambda_.7} parent=5 // pred_check
      _
    $region10: #{_lambda_.7} parent=5 // pred_check_branch
      %132 = sbr.rel (%p129) target = $region12
    $region11: #{_lambda_.7} parent=5 // pred_region
      %s133 = ssub.s32 %s9, 1
      // Predicated region
      $region13: #{_lambda_.7} parent=11 // pred_check
        %p134 = pneg %p70
      $region14: #{_lambda_.7} parent=11 // pred_check_branch
        %136 = sbr.rel (%p134) target = $region16
      $region15: #{_lambda_.7} parent=11 // pred_region
        _
      $region16: #{_lambda_.7} parent=11 // pred_fallthru
        _
      // Predicated region
      $region17: #{_lambda_.7} parent=11 // pred_check
        %p137 = pneg %p91
      $region18: #{_lambda_.7} parent=11 // pred_check_branch
        %139 = sbr.rel (%p137) target = $region20
      $region19: #{_lambda_.7} parent=11 // pred_region
        _
      $region20: #{_lambda_.7} parent=11 // pred_fallthru
        _
    $region12: #{_lambda_.7} parent=5 // pred_fallthru
      _
    %p140 = scmp.lt.s32.totalorder %s9, 2
    // Predicated region
    $region21: #{_lambda_.7} parent=5 // pred_check
      %p141 = pneg %p140
    $region22: #{_lambda_.7} parent=5 // pred_check_branch
      %143 = sbr.rel (%p141) target = $region24
    $region23: #{_lambda_.7} parent=5 // pred_region
      // Predicated region
      $region25: #{_lambda_.7} parent=23 // pred_check
        %p144 = pneg %p43
      $region26: #{_lambda_.7} parent=23 // pred_check_branch
        %146 = sbr.rel (%p144) target = $region28
      $region27: #{_lambda_.7} parent=23 // pred_region
        %p147 = scmp.lt.s32.totalorder %s16, 1
        %s148 = scalar_select %p147, %s16, 1
        %p149 = scmp.lt.s32.totalorder %s17, 0
        %s150 = scalar_select %p149, %s17, 0
        %s151 = smul.addr %s148, 2
        %s152 = sadd.s32 %s150, %s151
        %s153 = smul.addr %s152, 4
        %s154 = scalar_lea.vmem %s0, %s153
      $region28: #{_lambda_.7} parent=23 // pred_fallthru
        _
    $region24: #{_lambda_.7} parent=5 // pred_fallthru
      _
    %p155 = scmp.le.s32.totalorder 1, %s9
    %p156 = scmp.lt.s32.totalorder %s9, 3
    %p157 = pnand %p155, %p156
    %p158 = pneg %p157
    // Predicated region
    $region29: #{_lambda_.7} parent=5 // pred_check
      _
    $region30: #{_lambda_.7} parent=5 // pred_check_branch
      %160 = sbr.rel (%p157) target = $region32
    $region31: #{_lambda_.7} parent=5 // pred_region
      %s161 = ssub.s32 %s9, 1
      %p162 = scmp.lt.s32.totalorder %s18, 1
      %s163 = scalar_select %p162, %s18, 1
      %p164 = scmp.lt.s32.totalorder %s19, 0
      %s165 = scalar_select %p164, %s19, 0
      %s166 = smul.addr %s163, 2
      %s167 = sadd.s32 %s165, %s166
      %s168 = smul.addr %s167, 4
      %s169 = scalar_lea.vmem %s0, %s168
      %p170 = pneg %p49
      %p171 = pneg %p46
      %p172 = pneg %p70
      %p173 = pneg %p67
      %p174 = pneg %p91
      %p175 = pneg %p88
      %p176 = pneg %p119
      %p177 = pneg %p116
      %p178 = scmp.lt.s32.totalorder %s18, 1
      %s179 = scalar_select %p178, %s18, 1
      %p180 = scmp.lt.s32.totalorder %s19, 0
      %s181 = scalar_select %p180, %s19, 0
      %s182 = smul.addr %s179, 2
      %s183 = sadd.s32 %s181, %s182
      %s184 = smul.addr %s183, 8
      %s185 = scalar_lea.vmem %s3, %s184
      %p186 = scmp.lt.s32.totalorder %s18, 1
      %s187 = scalar_select %p186, %s18, 1
      %p188 = scmp.lt.s32.totalorder %s19, 0
      %s189 = scalar_select %p188, %s19, 0
      %s190 = smul.addr %s187, 2
      %s191 = sadd.s32 %s189, %s190
      %s192 = smul.addr %s191, 4
      %s193 = scalar_lea.vmem %s0, %s192
      %p194 = scmp.lt.s32.totalorder %s18, 1
      %s195 = scalar_select %p194, %s18, 1
      %p196 = scmp.lt.s32.totalorder %s19, 0
      %s197 = scalar_select %p196, %s19, 0
      %s198 = smul.addr %s195, 2
      %s199 = sadd.s32 %s197, %s198
      %s200 = smul.addr %s199, 8
      %s201 = scalar_lea.vmem %s3, %s200
      %v202 = vld [vmem:[%s193] sm:$0xf]
      %v203 = vld [vmem:[%s193 + $0x4] sm:$0xf]
      %v204 = vunpack.c.l.bf16 %v202
      %v205 = vunpack.c.l.bf16 %v203
      %v206 = vld [vmem:[%s1] sm:$0xff]
      %v207 = vld [vmem:[%s1 + $0x8] sm:$0xff]
      %209 = vset.pattern.permute.xlu0 0
      %210 = vperm.xlu0 %209, %v206
      %v211 = vpop.permute.xlu0 %210
      %214 = vset.pattern.permute.xlu0 0
      %215 = vperm.xlu0 %214, %v207
      %v216 = vpop.permute.xlu0 %215
      %v218 = vmul.f32 %v204, %v211
      %v219 = vmul.f32 %v205, %v216
      %v220 = vld [vmem:[%s2] sm:$0xff]
      %v221 = vld [vmem:[%s2 + $0x8] sm:$0xff]
      %223 = vset.pattern.permute.xlu0 0
      %224 = vperm.xlu0 %223, %v220
      %v225 = vpop.permute.xlu0 %224
      %228 = vset.pattern.permute.xlu0 0
      %229 = vperm.xlu0 %228, %v221
      %v230 = vpop.permute.xlu0 %229
      %v232 = vadd.f32 %v218, %v225
      %v233 = vadd.f32 %v219, %v230
      %v234 = vmax.f32 %v232, 0.0
      %v235 = vmax.f32 %v233, 0.0
      %236 = vst [vmem:[%s201] sm:$0xff] %v234
      %237 = vst [vmem:[%s201 + $0x8] sm:$0xff] %v235
      %p238 = scmp.lt.s32.totalorder %s18, 1
      %s239 = scalar_select %p238, %s18, 1
      %p240 = scmp.lt.s32.totalorder %s19, 0
      %s241 = scalar_select %p240, %s19, 0
      %s242 = smul.addr %s239, 2
      %s243 = sadd.s32 %s241, %s242
      %s244 = smul.addr %s243, 8
      %s245 = scalar_lea.vmem %s3, %s244
      // Predicated region
      $region33: #{_lambda_.7} parent=31 // pred_check
        %p246 = pneg %p116
      $region34: #{_lambda_.7} parent=31 // pred_check_branch
        %248 = sbr.rel (%p246) target = $region36
      $region35: #{_lambda_.7} parent=31 // pred_region
        _
      $region36: #{_lambda_.7} parent=31 // pred_fallthru
        _
    $region32: #{_lambda_.7} parent=5 // pred_fallthru
      _
    %p249 = scmp.le.s32.totalorder 2, %s9
    // Predicated region
    $region37: #{_lambda_.7} parent=5 // pred_check
      %p250 = pneg %p249
    $region38: #{_lambda_.7} parent=5 // pred_check_branch
      %252 = sbr.rel (%p250) target = $region40
    $region39: #{_lambda_.7} parent=5 // pred_region
      %s253 = ssub.s32 %s9, 2
      // Predicated region
      $region41: #{_lambda_.7} parent=39 // pred_check
        %p254 = pneg %p122
      $region42: #{_lambda_.7} parent=39 // pred_check_branch
        %256 = sbr.rel (%p254) target = $region44
      $region43: #{_lambda_.7} parent=39 // pred_region
        %p257 = scmp.lt.s32.totalorder %s20, 1
        %s258 = scalar_select %p257, %s20, 1
        %p259 = scmp.lt.s32.totalorder %s21, 0
        %s260 = scalar_select %p259, %s21, 0
        %s261 = smul.addr %s258, 2
        %s262 = sadd.s32 %s260, %s261
        %s263 = smul.addr %s262, 8
        %s264 = scalar_lea.vmem %s3, %s263
      $region44: #{_lambda_.7} parent=39 // pred_fallthru
        _
    $region40: #{_lambda_.7} parent=5 // pred_fallthru
      _
  $region6: #{_lambda_.7} parent=0 // loop_footer
    %s13 = sadd.s32 1, %s9
  $region7: #{_lambda_.7} parent=0 // loop_footer_branch
    %8 = sbr.rel target = $region3
  $region8: #{_lambda_.7} parent=0 // loop_exit
    _

</llo_original>
